<compile_context>
chip_gen: v5e
topology: v5e:2x2
jax: 0.10.0
libtpu: 0.0.40
codegen_flags: <defaults>
</compile_context>

<pallas_src>
import functools
import math

import jax
import jax.numpy as jnp
from jax.experimental import pallas as pl
from jax.experimental.pallas import tpu as pltpu

_EPS_BN = 1e-5


# ---------------------------------------------------------------------------
# Single fused kernel: adjacency + all TCN layers + end conv
# ---------------------------------------------------------------------------
def _tcn_fused_kernel(x_ref, m1_ref, m2_ref, wconv_ref, bconv_ref, bn_ref,
                      *rest, dilations, seq_lens, hops, batch, n):
    num_layers = len(dilations)
    gcn_refs = rest[:2 * num_layers]          # per layer: (wgcn_big, bgcn_big)
    w_end_ref = rest[2 * num_layers]
    b_end_ref = rest[2 * num_layers + 1]
    out_ref = rest[2 * num_layers + 2]

    # adaptive adjacency A = softmax(relu(M1 @ M2), axis=1); VMEM-resident,
    # reused by every layer.
    logits = jnp.maximum(
        jnp.dot(m1_ref[...], m2_ref[...], preferred_element_type=jnp.float32), 0.0)
    e = jnp.exp(logits - jnp.max(logits, axis=1, keepdims=True))
    adj = e / jnp.sum(e, axis=1, keepdims=True)                   # [N, N]

    # activations kept batch-concatenated along the lane (time) axis: [N, B*L]
    cur = jnp.concatenate([x_ref[b] for b in range(batch)], axis=1)

    skip = None
    lskip = 0
    for i, d in enumerate(dilations):
        lin = seq_lens[i]
        lout = seq_lens[i + 1]

        # per-batch dilated-conv taps, re-concatenated along the lane axis
        xl = jnp.concatenate(
            [cur[:, b * lin: b * lin + lout] for b in range(batch)], axis=1)
        xr = jnp.concatenate(
            [cur[:, b * lin + d: (b + 1) * lin] for b in range(batch)], axis=1)

        # fused filter+gate dilated conv: ONE [2N,2N] @ [2N, B*Lout] matmul
        xc = jnp.concatenate([xl, xr], axis=0)                    # [2N, B*Lout]
        fg = (jnp.dot(wconv_ref[i], xc, preferred_element_type=jnp.float32)
              + bconv_ref[i])                                     # [2N, B*Lout]
        xg = jnp.tanh(fg[:n, :]) * jax.nn.sigmoid(fg[n:, :])      # [N, B*Lout]

        # skip connection: skip = xg + skip_prev[..., -Lout:]  (just xg on layer 0)
        if skip is None:
            skip = xg
        else:
            skip = xg + jnp.concatenate(
                [skip[:, b * lskip + (lskip - lout): (b + 1) * lskip]
                 for b in range(batch)], axis=1)
        lskip = lout

        # GCN: hop propagation, then ONE projection matmul over concat'd hops
        h = xg
        hs = [h]
        for _ in range(hops):
            h = jnp.dot(adj, h, preferred_element_type=jnp.float32)
            hs.append(h)
        hc = jnp.concatenate(hs, axis=1)                          # [N,(hops+1)*B*Lout]
        gcn = (jnp.dot(hc, gcn_refs[2 * i][...],
                       preferred_element_type=jnp.float32)
               + gcn_refs[2 * i + 1][...])                        # [N, B*Lout]

        # residual add + folded BatchNorm2d(1) (eval): y * scale + shift
        cur = (gcn + xr) * bn_ref[i, 0] + bn_ref[i, 1]

    # relu(skip) -> end 1x1 conv (in_channels=1); final per-batch skip width is 1
    s = jnp.maximum(skip, 0.0)                                    # [N, B]
    out_ref[...] = jnp.concatenate(
        [s[:, b: b + 1] * w_end_ref[...] + b_end_ref[...] for b in range(batch)],
        axis=1)                                                   # [N, B*Tout]


# ---------------------------------------------------------------------------
# Parameter construction (deterministic), with wrapper-side weight fusion
# ---------------------------------------------------------------------------
def init_params(key, n, tin, tout, batch, blocks=4, layers=2, kernel_size=2,
                hops=2, emb=10):
    keys = iter(jax.random.split(key, 8 * blocks * layers + 8))
    p = {'hops': hops, 'batch': batch}
    p['m1'] = 0.5 * jax.random.normal(next(keys), (n, emb), jnp.float32)
    p['m2'] = 0.5 * jax.random.normal(next(keys), (emb, n), jnp.float32)

    receptive_field = 1
    t = tin + 1
    dilations, seq_lens = [], [t]
    wconv, bconv, wgcn_big, bgcn_big, bn_rows = [], [], [], [], []
    eye_b = jnp.eye(batch, dtype=jnp.float32)
    for _ in range(blocks):
        additional_scope = kernel_size - 1
        d = 1
        for _ in range(layers):
            t = t - kernel_size + 1 - d + 1
            cs = 1.0 / math.sqrt(n * kernel_size)
            wf = jax.random.uniform(next(keys), (n, n, kernel_size), jnp.float32, -cs, cs)
            bf = jax.random.uniform(next(keys), (n, 1), jnp.float32, -cs, cs)
            wg = jax.random.uniform(next(keys), (n, n, kernel_size), jnp.float32, -cs, cs)
            bg = jax.random.uniform(next(keys), (n, 1), jnp.float32, -cs, cs)
            # stacked [[wf0 wf1],[wg0 wg1]] -> [2N,2N]: one MXU matmul per layer
            wconv.append(jnp.concatenate([
                jnp.concatenate([wf[:, :, 0], wf[:, :, 1]], axis=1),
                jnp.concatenate([wg[:, :, 0], wg[:, :, 1]], axis=1)], axis=0))
            bconv.append(jnp.concatenate([bf, bg], axis=0))
            ls = 1.0 / math.sqrt((hops + 1) * t)
            wgcn = jax.random.uniform(next(keys), ((hops + 1) * t, t), jnp.float32, -ls, ls)
            bgcn = jax.random.uniform(next(keys), (1, t), jnp.float32, -ls, ls)
            # batch-block-diagonal, hop-concatenated GCN projection (one matmul)
            wgcn_big.append(jnp.concatenate(
                [jnp.kron(eye_b, wgcn[k * t:(k + 1) * t, :]) for k in range(hops + 1)],
                axis=0))                                          # [(hops+1)*B*t, B*t]
            bgcn_big.append(jnp.tile(bgcn, (1, batch)))           # [1, B*t]
            # BatchNorm2d(1) eval (gamma=1, beta=0, rmean=0, rvar=1) -> scale/shift
            gamma, beta, rmean, rvar = 1.0, 0.0, 0.0, 1.0
            scale = gamma / math.sqrt(rvar + _EPS_BN)
            bn_rows.append([scale, beta - rmean * scale])
            dilations.append(d)
            seq_lens.append(t)
            receptive_field += additional_scope
            additional_scope *= 2
            d *= 2
    p['wconv'] = jnp.stack(wconv)                 # [L, 2N, 2N]
    p['bconv'] = jnp.stack(bconv)                 # [L, 2N, 1]
    p['wgcn_big'] = wgcn_big                      # list, per-layer shapes
    p['bgcn_big'] = bgcn_big
    p['bn'] = jnp.array(bn_rows, jnp.float32)     # [L, 2] scale/shift (SMEM)
    p['dilations'] = dilations
    p['seq_lens'] = seq_lens
    p['receptive_field'] = receptive_field
    p['w_end'] = jax.random.uniform(next(keys), (1, tout), jnp.float32, -1.0, 1.0)
    p['b_end'] = jax.random.uniform(next(keys), (1, tout), jnp.float32, -1.0, 1.0)
    return p


# ---------------------------------------------------------------------------
# Forward glue: pad, one pallas_call, final layout fix
# ---------------------------------------------------------------------------
def tcn_forward(x, p):
    """x: [batch, N, Tin]  ->  [batch, N, Tout]"""
    b, n, tin = x.shape
    rf = p['receptive_field']
    if tin < rf:
        x = jnp.pad(x, ((0, 0), (0, 0), (rf - tin, 0)))
    seq_lens = tuple(p['seq_lens'])
    dilations = tuple(p['dilations'])
    num_layers = len(dilations)
    tout = p['w_end'].shape[1]
    # the module's GCN time bookkeeping assumes padded length == Tin + 1, and
    # end_conv(in_channels=1) requires the final time length to be 1.
    assert x.shape[2] == seq_lens[0]
    assert seq_lens[-1] == 1
    assert b == p['batch']

    kernel = functools.partial(
        _tcn_fused_kernel, dilations=dilations, seq_lens=seq_lens,
        hops=p['hops'], batch=b, n=n)

    vmem = pl.BlockSpec(memory_space=pltpu.MemorySpace.VMEM)
    smem = pl.BlockSpec(memory_space=pltpu.MemorySpace.SMEM)

    gcn_inputs = []
    for i in range(num_layers):
        gcn_inputs += [p['wgcn_big'][i], p['bgcn_big'][i]]

    out = pl.pallas_call(
        kernel,
        out_shape=jax.ShapeDtypeStruct((n, b * tout), jnp.float32),
        in_specs=[vmem, vmem, vmem, vmem, vmem, smem]
                 + [vmem] * (2 * num_layers) + [vmem, vmem],
        out_specs=vmem,
    )(x, p['m1'], p['m2'], p['wconv'], p['bconv'], p['bn'],
      *gcn_inputs, p['w_end'], p['b_end'])

    # [N, B*Tout] (lane-dense store) -> [B, N, Tout]
    return jnp.transpose(out.reshape(n, b, tout), (1, 0, 2))


if __name__ == "__main__":
    B, N, TIN, TOUT = 2, 8, 12, 3          # channels == N; receptive_field = 13
    key = jax.random.PRNGKey(0)
    pkey, xkey = jax.random.split(key)
    params = init_params(pkey, N, TIN, TOUT, batch=B,
                         blocks=4, layers=2, kernel_size=2, hops=2)
    x = jax.random.normal(xkey, (B, N, TIN), jnp.float32)

    fwd = jax.jit(lambda xx: tcn_forward(xx, params))
    out = jax.block_until_ready(fwd(x))
    assert out.shape == (B, N, TOUT) and bool(jnp.all(jnp.isfinite(out)))
    print("KERNEL_OK")
</pallas_src>

<mosaic_0001>
module attributes {stable_mosaic.version = 11 : i64} {
  func.func @_tcn_fused_kernel(%arg0: memref<2x8x13xf32, #tpu.memory_space<vmem>>, %arg1: memref<8x10xf32, #tpu.memory_space<vmem>>, %arg2: memref<10x8xf32, #tpu.memory_space<vmem>>, %arg3: memref<8x16x16xf32, #tpu.memory_space<vmem>>, %arg4: memref<8x16x1xf32, #tpu.memory_space<vmem>>, %arg5: memref<8x2xf32, #tpu.memory_space<smem>>, %arg6: memref<72x24xf32, #tpu.memory_space<vmem>>, %arg7: memref<1x24xf32, #tpu.memory_space<vmem>>, %arg8: memref<60x20xf32, #tpu.memory_space<vmem>>, %arg9: memref<1x20xf32, #tpu.memory_space<vmem>>, %arg10: memref<54x18xf32, #tpu.memory_space<vmem>>, %arg11: memref<1x18xf32, #tpu.memory_space<vmem>>, %arg12: memref<42x14xf32, #tpu.memory_space<vmem>>, %arg13: memref<1x14xf32, #tpu.memory_space<vmem>>, %arg14: memref<36x12xf32, #tpu.memory_space<vmem>>, %arg15: memref<1x12xf32, #tpu.memory_space<vmem>>, %arg16: memref<24x8xf32, #tpu.memory_space<vmem>>, %arg17: memref<1x8xf32, #tpu.memory_space<vmem>>, %arg18: memref<18x6xf32, #tpu.memory_space<vmem>>, %arg19: memref<1x6xf32, #tpu.memory_space<vmem>>, %arg20: memref<6x2xf32, #tpu.memory_space<vmem>>, %arg21: memref<1x2xf32, #tpu.memory_space<vmem>>, %arg22: memref<1x3xf32, #tpu.memory_space<vmem>>, %arg23: memref<1x3xf32, #tpu.memory_space<vmem>>, %arg24: memref<8x6xf32, #tpu.memory_space<vmem>>) attributes {dimension_semantics = [], scalar_prefetch = 0 : i64, scratch_operands = 0 : i64, tpu.core_type = #tpu.core_type<tc>} {
    %c0 = arith.constant 0 : index
    %c0_0 = arith.constant 0 : index
    %0 = vector.load %arg1[%c0, %c0_0] : memref<8x10xf32, #tpu.memory_space<vmem>>, vector<8x10xf32>
    %c0_1 = arith.constant 0 : index
    %c0_2 = arith.constant 0 : index
    %1 = vector.load %arg2[%c0_1, %c0_2] : memref<10x8xf32, #tpu.memory_space<vmem>>, vector<10x8xf32>
    %cst = arith.constant dense<0.000000e+00> : vector<8x8xf32>
    %2 = tpu.matmul %0, %1, %cst {dimension_numbers = #tpu.dot_dimension_numbers<[1], [0], [0], [1], [0, 0, 1, 1], [], []>} : vector<8x10xf32>, vector<10x8xf32>, vector<8x8xf32> -> vector<8x8xf32>
    %cst_3 = arith.constant 0.000000e+00 : f32
    %3 = vector.broadcast %cst_3 : f32 to vector<8x8xf32>
    %4 = arith.maximumf %2, %3 : vector<8x8xf32>
    %cst_4 = arith.constant dense<0xFF800000> : vector<8xf32>
    %5 = vector.multi_reduction <maximumf>, %4, %cst_4 [1] : vector<8x8xf32> to vector<8xf32>
    %6 = vector.shape_cast %5 : vector<8xf32> to vector<8x1xf32>
    %7 = vector.broadcast %6 : vector<8x1xf32> to vector<8x8xf32>
    %8 = arith.subf %4, %7 : vector<8x8xf32>
    %9 = math.exp %8 : vector<8x8xf32>
    %cst_5 = arith.constant dense<0.000000e+00> : vector<8xf32>
    %10 = vector.multi_reduction <add>, %9, %cst_5 [1] : vector<8x8xf32> to vector<8xf32>
    %11 = vector.shape_cast %10 : vector<8xf32> to vector<8x1xf32>
    %12 = vector.broadcast %11 : vector<8x1xf32> to vector<8x8xf32>
    %13 = arith.divf %9, %12 : vector<8x8xf32>
    %c0_6 = arith.constant 0 : index
    %c0_7 = arith.constant 0 : index
    %c0_8 = arith.constant 0 : index
    %14 = vector.load %arg0[%c0_6, %c0_7, %c0_8] : memref<2x8x13xf32, #tpu.memory_space<vmem>>, vector<1x8x13xf32>
    %15 = vector.shape_cast %14 : vector<1x8x13xf32> to vector<8x13xf32>
    %c1 = arith.constant 1 : index
    %c0_9 = arith.constant 0 : index
    %c0_10 = arith.constant 0 : index
    %16 = vector.load %arg0[%c1, %c0_9, %c0_10] : memref<2x8x13xf32, #tpu.memory_space<vmem>>, vector<1x8x13xf32>
    %17 = vector.shape_cast %16 : vector<1x8x13xf32> to vector<8x13xf32>
    %18 = tpu.concatenate %15, %17 in 1 : vector<8x13xf32>, vector<8x13xf32> -> vector<8x26xf32>
    %19 = vector.extract_strided_slice %18 {offsets = [0, 0], sizes = [8, 12], strides = [1, 1]} : vector<8x26xf32> to vector<8x12xf32>
    %20 = vector.extract_strided_slice %18 {offsets = [0, 13], sizes = [8, 12], strides = [1, 1]} : vector<8x26xf32> to vector<8x12xf32>
    %21 = tpu.concatenate %19, %20 in 1 : vector<8x12xf32>, vector<8x12xf32> -> vector<8x24xf32>
    %22 = vector.extract_strided_slice %18 {offsets = [0, 1], sizes = [8, 12], strides = [1, 1]} : vector<8x26xf32> to vector<8x12xf32>
    %23 = vector.extract_strided_slice %18 {offsets = [0, 14], sizes = [8, 12], strides = [1, 1]} : vector<8x26xf32> to vector<8x12xf32>
    %24 = tpu.concatenate %22, %23 in 1 : vector<8x12xf32>, vector<8x12xf32> -> vector<8x24xf32>
    %25 = tpu.concatenate %21, %24 in 0 : vector<8x24xf32>, vector<8x24xf32> -> vector<16x24xf32>
    %c0_11 = arith.constant 0 : index
    %c0_12 = arith.constant 0 : index
    %c0_13 = arith.constant 0 : index
    %26 = vector.load %arg3[%c0_11, %c0_12, %c0_13] : memref<8x16x16xf32, #tpu.memory_space<vmem>>, vector<1x16x16xf32>
    %27 = vector.shape_cast %26 : vector<1x16x16xf32> to vector<16x16xf32>
    %cst_14 = arith.constant dense<0.000000e+00> : vector<16x24xf32>
    %28 = tpu.matmul %27, %25, %cst_14 {dimension_numbers = #tpu.dot_dimension_numbers<[1], [0], [0], [1], [0, 0, 1, 1], [], []>} : vector<16x16xf32>, vector<16x24xf32>, vector<16x24xf32> -> vector<16x24xf32>
    %c0_15 = arith.constant 0 : index
    %c0_16 = arith.constant 0 : index
    %c0_17 = arith.constant 0 : index
    %29 = vector.load %arg4[%c0_15, %c0_16, %c0_17] : memref<8x16x1xf32, #tpu.memory_space<vmem>>, vector<1x16x1xf32>
    %30 = vector.shape_cast %29 : vector<1x16x1xf32> to vector<16x1xf32>
    %31 = vector.broadcast %30 : vector<16x1xf32> to vector<16x24xf32>
    %32 = arith.addf %28, %31 : vector<16x24xf32>
    %33 = vector.extract_strided_slice %32 {offsets = [0, 0], sizes = [8, 24], strides = [1, 1]} : vector<16x24xf32> to vector<8x24xf32>
    %34 = math.tanh %33 : vector<8x24xf32>
    %35 = vector.extract_strided_slice %32 {offsets = [8, 0], sizes = [8, 24], strides = [1, 1]} : vector<16x24xf32> to vector<8x24xf32>
    %36 = arith.negf %35 : vector<8x24xf32>
    %37 = math.exp %36 : vector<8x24xf32>
    %cst_18 = arith.constant 1.000000e+00 : f32
    %38 = vector.broadcast %cst_18 : f32 to vector<8x24xf32>
    %39 = arith.addf %38, %37 : vector<8x24xf32>
    %40 = arith.divf %38, %39 : vector<8x24xf32>
    %41 = arith.mulf %34, %40 : vector<8x24xf32>
    %cst_19 = arith.constant dense<0.000000e+00> : vector<8x24xf32>
    %42 = tpu.matmul %13, %41, %cst_19 {dimension_numbers = #tpu.dot_dimension_numbers<[1], [0], [0], [1], [0, 0, 1, 1], [], []>} : vector<8x8xf32>, vector<8x24xf32>, vector<8x24xf32> -> vector<8x24xf32>
    %cst_20 = arith.constant dense<0.000000e+00> : vector<8x24xf32>
    %43 = tpu.matmul %13, %42, %cst_20 {dimension_numbers = #tpu.dot_dimension_numbers<[1], [0], [0], [1], [0, 0, 1, 1], [], []>} : vector<8x8xf32>, vector<8x24xf32>, vector<8x24xf32> -> vector<8x24xf32>
    %44 = tpu.concatenate %41, %42, %43 in 1 : vector<8x24xf32>, vector<8x24xf32>, vector<8x24xf32> -> vector<8x72xf32>
    %c0_21 = arith.constant 0 : index
    %c0_22 = arith.constant 0 : index
    %45 = vector.load %arg6[%c0_21, %c0_22] : memref<72x24xf32, #tpu.memory_space<vmem>>, vector<72x24xf32>
    %cst_23 = arith.constant dense<0.000000e+00> : vector<8x24xf32>
    %46 = tpu.matmul %44, %45, %cst_23 {dimension_numbers = #tpu.dot_dimension_numbers<[1], [0], [0], [1], [0, 0, 1, 1], [], []>} : vector<8x72xf32>, vector<72x24xf32>, vector<8x24xf32> -> vector<8x24xf32>
    %c0_24 = arith.constant 0 : index
    %c0_25 = arith.constant 0 : index
    %47 = vector.load %arg7[%c0_24, %c0_25] : memref<1x24xf32, #tpu.memory_space<vmem>>, vector<1x24xf32>
    %48 = vector.broadcast %47 : vector<1x24xf32> to vector<8x24xf32>
    %49 = arith.addf %46, %48 : vector<8x24xf32>
    %50 = arith.addf %49, %24 : vector<8x24xf32>
    %c0_26 = arith.constant 0 : index
    %c0_27 = arith.constant 0 : index
    %51 = memref.load %arg5[%c0_26, %c0_27] : memref<8x2xf32, #tpu.memory_space<smem>>
    %52 = vector.broadcast %51 : f32 to vector<8x24xf32>
    %53 = arith.mulf %50, %52 : vector<8x24xf32>
    %c0_28 = arith.constant 0 : index
    %c1_29 = arith.constant 1 : index
    %54 = memref.load %arg5[%c0_28, %c1_29] : memref<8x2xf32, #tpu.memory_space<smem>>
    %55 = vector.broadcast %54 : f32 to vector<8x24xf32>
    %56 = arith.addf %53, %55 : vector<8x24xf32>
    %57 = vector.extract_strided_slice %56 {offsets = [0, 0], sizes = [8, 10], strides = [1, 1]} : vector<8x24xf32> to vector<8x10xf32>
    %58 = vector.extract_strided_slice %56 {offsets = [0, 12], sizes = [8, 10], strides = [1, 1]} : vector<8x24xf32> to vector<8x10xf32>
    %59 = tpu.concatenate %57, %58 in 1 : vector<8x10xf32>, vector<8x10xf32> -> vector<8x20xf32>
    %60 = vector.extract_strided_slice %56 {offsets = [0, 2], sizes = [8, 10], strides = [1, 1]} : vector<8x24xf32> to vector<8x10xf32>
    %61 = vector.extract_strided_slice %56 {offsets = [0, 14], sizes = [8, 10], strides = [1, 1]} : vector<8x24xf32> to vector<8x10xf32>
    %62 = tpu.concatenate %60, %61 in 1 : vector<8x10xf32>, vector<8x10xf32> -> vector<8x20xf32>
    %63 = tpu.concatenate %59, %62 in 0 : vector<8x20xf32>, vector<8x20xf32> -> vector<16x20xf32>
    %c1_30 = arith.constant 1 : index
    %c0_31 = arith.constant 0 : index
    %c0_32 = arith.constant 0 : index
    %64 = vector.load %arg3[%c1_30, %c0_31, %c0_32] : memref<8x16x16xf32, #tpu.memory_space<vmem>>, vector<1x16x16xf32>
    %65 = vector.shape_cast %64 : vector<1x16x16xf32> to vector<16x16xf32>
    %cst_33 = arith.constant dense<0.000000e+00> : vector<16x20xf32>
    %66 = tpu.matmul %65, %63, %cst_33 {dimension_numbers = #tpu.dot_dimension_numbers<[1], [0], [0], [1], [0, 0, 1, 1], [], []>} : vector<16x16xf32>, vector<16x20xf32>, vector<16x20xf32> -> vector<16x20xf32>
    %c1_34 = arith.constant 1 : index
    %c0_35 = arith.constant 0 : index
    %c0_36 = arith.constant 0 : index
    %67 = vector.load %arg4[%c1_34, %c0_35, %c0_36] : memref<8x16x1xf32, #tpu.memory_space<vmem>>, vector<1x16x1xf32>
    %68 = vector.shape_cast %67 : vector<1x16x1xf32> to vector<16x1xf32>
    %69 = vector.broadcast %68 : vector<16x1xf32> to vector<16x20xf32>
    %70 = arith.addf %66, %69 : vector<16x20xf32>
    %71 = vector.extract_strided_slice %70 {offsets = [0, 0], sizes = [8, 20], strides = [1, 1]} : vector<16x20xf32> to vector<8x20xf32>
    %72 = math.tanh %71 : vector<8x20xf32>
    %73 = vector.extract_strided_slice %70 {offsets = [8, 0], sizes = [8, 20], strides = [1, 1]} : vector<16x20xf32> to vector<8x20xf32>
    %74 = arith.negf %73 : vector<8x20xf32>
    %75 = math.exp %74 : vector<8x20xf32>
    %cst_37 = arith.constant 1.000000e+00 : f32
    %76 = vector.broadcast %cst_37 : f32 to vector<8x20xf32>
    %77 = arith.addf %76, %75 : vector<8x20xf32>
    %78 = arith.divf %76, %77 : vector<8x20xf32>
    %79 = arith.mulf %72, %78 : vector<8x20xf32>
    %80 = vector.extract_strided_slice %41 {offsets = [0, 2], sizes = [8, 10], strides = [1, 1]} : vector<8x24xf32> to vector<8x10xf32>
    %81 = vector.extract_strided_slice %41 {offsets = [0, 14], sizes = [8, 10], strides = [1, 1]} : vector<8x24xf32> to vector<8x10xf32>
    %82 = tpu.concatenate %80, %81 in 1 : vector<8x10xf32>, vector<8x10xf32> -> vector<8x20xf32>
    %83 = arith.addf %79, %82 : vector<8x20xf32>
    %cst_38 = arith.constant dense<0.000000e+00> : vector<8x20xf32>
    %84 = tpu.matmul %13, %79, %cst_38 {dimension_numbers = #tpu.dot_dimension_numbers<[1], [0], [0], [1], [0, 0, 1, 1], [], []>} : vector<8x8xf32>, vector<8x20xf32>, vector<8x20xf32> -> vector<8x20xf32>
    %cst_39 = arith.constant dense<0.000000e+00> : vector<8x20xf32>
    %85 = tpu.matmul %13, %84, %cst_39 {dimension_numbers = #tpu.dot_dimension_numbers<[1], [0], [0], [1], [0, 0, 1, 1], [], []>} : vector<8x8xf32>, vector<8x20xf32>, vector<8x20xf32> -> vector<8x20xf32>
    %86 = tpu.concatenate %79, %84, %85 in 1 : vector<8x20xf32>, vector<8x20xf32>, vector<8x20xf32> -> vector<8x60xf32>
    %c0_40 = arith.constant 0 : index
    %c0_41 = arith.constant 0 : index
    %87 = vector.load %arg8[%c0_40, %c0_41] : memref<60x20xf32, #tpu.memory_space<vmem>>, vector<60x20xf32>
    %cst_42 = arith.constant dense<0.000000e+00> : vector<8x20xf32>
    %88 = tpu.matmul %86, %87, %cst_42 {dimension_numbers = #tpu.dot_dimension_numbers<[1], [0], [0], [1], [0, 0, 1, 1], [], []>} : vector<8x60xf32>, vector<60x20xf32>, vector<8x20xf32> -> vector<8x20xf32>
    %c0_43 = arith.constant 0 : index
    %c0_44 = arith.constant 0 : index
    %89 = vector.load %arg9[%c0_43, %c0_44] : memref<1x20xf32, #tpu.memory_space<vmem>>, vector<1x20xf32>
    %90 = vector.broadcast %89 : vector<1x20xf32> to vector<8x20xf32>
    %91 = arith.addf %88, %90 : vector<8x20xf32>
    %92 = arith.addf %91, %62 : vector<8x20xf32>
    %c1_45 = arith.constant 1 : index
    %c0_46 = arith.constant 0 : index
    %93 = memref.load %arg5[%c1_45, %c0_46] : memref<8x2xf32, #tpu.memory_space<smem>>
    %94 = vector.broadcast %93 : f32 to vector<8x20xf32>
    %95 = arith.mulf %92, %94 : vector<8x20xf32>
    %c1_47 = arith.constant 1 : index
    %c1_48 = arith.constant 1 : index
    %96 = memref.load %arg5[%c1_47, %c1_48] : memref<8x2xf32, #tpu.memory_space<smem>>
    %97 = vector.broadcast %96 : f32 to vector<8x20xf32>
    %98 = arith.addf %95, %97 : vector<8x20xf32>
    %99 = vector.extract_strided_slice %98 {offsets = [0, 0], sizes = [8, 9], strides = [1, 1]} : vector<8x20xf32> to vector<8x9xf32>
    %100 = vector.extract_strided_slice %98 {offsets = [0, 10], sizes = [8, 9], strides = [1, 1]} : vector<8x20xf32> to vector<8x9xf32>
    %101 = tpu.concatenate %99, %100 in 1 : vector<8x9xf32>, vector<8x9xf32> -> vector<8x18xf32>
    %102 = vector.extract_strided_slice %98 {offsets = [0, 1], sizes = [8, 9], strides = [1, 1]} : vector<8x20xf32> to vector<8x9xf32>
    %103 = vector.extract_strided_slice %98 {offsets = [0, 11], sizes = [8, 9], strides = [1, 1]} : vector<8x20xf32> to vector<8x9xf32>
    %104 = tpu.concatenate %102, %103 in 1 : vector<8x9xf32>, vector<8x9xf32> -> vector<8x18xf32>
    %105 = tpu.concatenate %101, %104 in 0 : vector<8x18xf32>, vector<8x18xf32> -> vector<16x18xf32>
    %c2 = arith.constant 2 : index
    %c0_49 = arith.constant 0 : index
    %c0_50 = arith.constant 0 : index
    %106 = vector.load %arg3[%c2, %c0_49, %c0_50] : memref<8x16x16xf32, #tpu.memory_space<vmem>>, vector<1x16x16xf32>
    %107 = vector.shape_cast %106 : vector<1x16x16xf32> to vector<16x16xf32>
    %cst_51 = arith.constant dense<0.000000e+00> : vector<16x18xf32>
    %108 = tpu.matmul %107, %105, %cst_51 {dimension_numbers = #tpu.dot_dimension_numbers<[1], [0], [0], [1], [0, 0, 1, 1], [], []>} : vector<16x16xf32>, vector<16x18xf32>, vector<16x18xf32> -> vector<16x18xf32>
    %c2_52 = arith.constant 2 : index
    %c0_53 = arith.constant 0 : index
    %c0_54 = arith.constant 0 : index
    %109 = vector.load %arg4[%c2_52, %c0_53, %c0_54] : memref<8x16x1xf32, #tpu.memory_space<vmem>>, vector<1x16x1xf32>
    %110 = vector.shape_cast %109 : vector<1x16x1xf32> to vector<16x1xf32>
    %111 = vector.broadcast %110 : vector<16x1xf32> to vector<16x18xf32>
    %112 = arith.addf %108, %111 : vector<16x18xf32>
    %113 = vector.extract_strided_slice %112 {offsets = [0, 0], sizes = [8, 18], strides = [1, 1]} : vector<16x18xf32> to vector<8x18xf32>
    %114 = math.tanh %113 : vector<8x18xf32>
    %115 = vector.extract_strided_slice %112 {offsets = [8, 0], sizes = [8, 18], strides = [1, 1]} : vector<16x18xf32> to vector<8x18xf32>
    %116 = arith.negf %115 : vector<8x18xf32>
    %117 = math.exp %116 : vector<8x18xf32>
    %cst_55 = arith.constant 1.000000e+00 : f32
    %118 = vector.broadcast %cst_55 : f32 to vector<8x18xf32>
    %119 = arith.addf %118, %117 : vector<8x18xf32>
    %120 = arith.divf %118, %119 : vector<8x18xf32>
    %121 = arith.mulf %114, %120 : vector<8x18xf32>
    %122 = vector.extract_strided_slice %83 {offsets = [0, 1], sizes = [8, 9], strides = [1, 1]} : vector<8x20xf32> to vector<8x9xf32>
    %123 = vector.extract_strided_slice %83 {offsets = [0, 11], sizes = [8, 9], strides = [1, 1]} : vector<8x20xf32> to vector<8x9xf32>
    %124 = tpu.concatenate %122, %123 in 1 : vector<8x9xf32>, vector<8x9xf32> -> vector<8x18xf32>
    %125 = arith.addf %121, %124 : vector<8x18xf32>
    %cst_56 = arith.constant dense<0.000000e+00> : vector<8x18xf32>
    %126 = tpu.matmul %13, %121, %cst_56 {dimension_numbers = #tpu.dot_dimension_numbers<[1], [0], [0], [1], [0, 0, 1, 1], [], []>} : vector<8x8xf32>, vector<8x18xf32>, vector<8x18xf32> -> vector<8x18xf32>
    %cst_57 = arith.constant dense<0.000000e+00> : vector<8x18xf32>
    %127 = tpu.matmul %13, %126, %cst_57 {dimension_numbers = #tpu.dot_dimension_numbers<[1], [0], [0], [1], [0, 0, 1, 1], [], []>} : vector<8x8xf32>, vector<8x18xf32>, vector<8x18xf32> -> vector<8x18xf32>
    %128 = tpu.concatenate %121, %126, %127 in 1 : vector<8x18xf32>, vector<8x18xf32>, vector<8x18xf32> -> vector<8x54xf32>
    %c0_58 = arith.constant 0 : index
    %c0_59 = arith.constant 0 : index
    %129 = vector.load %arg10[%c0_58, %c0_59] : memref<54x18xf32, #tpu.memory_space<vmem>>, vector<54x18xf32>
    %cst_60 = arith.constant dense<0.000000e+00> : vector<8x18xf32>
    %130 = tpu.matmul %128, %129, %cst_60 {dimension_numbers = #tpu.dot_dimension_numbers<[1], [0], [0], [1], [0, 0, 1, 1], [], []>} : vector<8x54xf32>, vector<54x18xf32>, vector<8x18xf32> -> vector<8x18xf32>
    %c0_61 = arith.constant 0 : index
    %c0_62 = arith.constant 0 : index
    %131 = vector.load %arg11[%c0_61, %c0_62] : memref<1x18xf32, #tpu.memory_space<vmem>>, vector<1x18xf32>
    %132 = vector.broadcast %131 : vector<1x18xf32> to vector<8x18xf32>
    %133 = arith.addf %130, %132 : vector<8x18xf32>
    %134 = arith.addf %133, %104 : vector<8x18xf32>
    %c2_63 = arith.constant 2 : index
    %c0_64 = arith.constant 0 : index
    %135 = memref.load %arg5[%c2_63, %c0_64] : memref<8x2xf32, #tpu.memory_space<smem>>
    %136 = vector.broadcast %135 : f32 to vector<8x18xf32>
    %137 = arith.mulf %134, %136 : vector<8x18xf32>
    %c2_65 = arith.constant 2 : index
    %c1_66 = arith.constant 1 : index
    %138 = memref.load %arg5[%c2_65, %c1_66] : memref<8x2xf32, #tpu.memory_space<smem>>
    %139 = vector.broadcast %138 : f32 to vector<8x18xf32>
    %140 = arith.addf %137, %139 : vector<8x18xf32>
    %141 = vector.extract_strided_slice %140 {offsets = [0, 0], sizes = [8, 7], strides = [1, 1]} : vector<8x18xf32> to vector<8x7xf32>
    %142 = vector.extract_strided_slice %140 {offsets = [0, 9], sizes = [8, 7], strides = [1, 1]} : vector<8x18xf32> to vector<8x7xf32>
    %143 = tpu.concatenate %141, %142 in 1 : vector<8x7xf32>, vector<8x7xf32> -> vector<8x14xf32>
    %144 = vector.extract_strided_slice %140 {offsets = [0, 2], sizes = [8, 7], strides = [1, 1]} : vector<8x18xf32> to vector<8x7xf32>
    %145 = vector.extract_strided_slice %140 {offsets = [0, 11], sizes = [8, 7], strides = [1, 1]} : vector<8x18xf32> to vector<8x7xf32>
    %146 = tpu.concatenate %144, %145 in 1 : vector<8x7xf32>, vector<8x7xf32> -> vector<8x14xf32>
    %147 = tpu.concatenate %143, %146 in 0 : vector<8x14xf32>, vector<8x14xf32> -> vector<16x14xf32>
    %c3 = arith.constant 3 : index
    %c0_67 = arith.constant 0 : index
    %c0_68 = arith.constant 0 : index
    %148 = vector.load %arg3[%c3, %c0_67, %c0_68] : memref<8x16x16xf32, #tpu.memory_space<vmem>>, vector<1x16x16xf32>
    %149 = vector.shape_cast %148 : vector<1x16x16xf32> to vector<16x16xf32>
    %cst_69 = arith.constant dense<0.000000e+00> : vector<16x14xf32>
    %150 = tpu.matmul %149, %147, %cst_69 {dimension_numbers = #tpu.dot_dimension_numbers<[1], [0], [0], [1], [0, 0, 1, 1], [], []>} : vector<16x16xf32>, vector<16x14xf32>, vector<16x14xf32> -> vector<16x14xf32>
    %c3_70 = arith.constant 3 : index
    %c0_71 = arith.constant 0 : index
    %c0_72 = arith.constant 0 : index
    %151 = vector.load %arg4[%c3_70, %c0_71, %c0_72] : memref<8x16x1xf32, #tpu.memory_space<vmem>>, vector<1x16x1xf32>
    %152 = vector.shape_cast %151 : vector<1x16x1xf32> to vector<16x1xf32>
    %153 = vector.broadcast %152 : vector<16x1xf32> to vector<16x14xf32>
    %154 = arith.addf %150, %153 : vector<16x14xf32>
    %155 = vector.extract_strided_slice %154 {offsets = [0, 0], sizes = [8, 14], strides = [1, 1]} : vector<16x14xf32> to vector<8x14xf32>
    %156 = math.tanh %155 : vector<8x14xf32>
    %157 = vector.extract_strided_slice %154 {offsets = [8, 0], sizes = [8, 14], strides = [1, 1]} : vector<16x14xf32> to vector<8x14xf32>
    %158 = arith.negf %157 : vector<8x14xf32>
    %159 = math.exp %158 : vector<8x14xf32>
    %cst_73 = arith.constant 1.000000e+00 : f32
    %160 = vector.broadcast %cst_73 : f32 to vector<8x14xf32>
    %161 = arith.addf %160, %159 : vector<8x14xf32>
    %162 = arith.divf %160, %161 : vector<8x14xf32>
    %163 = arith.mulf %156, %162 : vector<8x14xf32>
    %164 = vector.extract_strided_slice %125 {offsets = [0, 2], sizes = [8, 7], strides = [1, 1]} : vector<8x18xf32> to vector<8x7xf32>
    %165 = vector.extract_strided_slice %125 {offsets = [0, 11], sizes = [8, 7], strides = [1, 1]} : vector<8x18xf32> to vector<8x7xf32>
    %166 = tpu.concatenate %164, %165 in 1 : vector<8x7xf32>, vector<8x7xf32> -> vector<8x14xf32>
    %167 = arith.addf %163, %166 : vector<8x14xf32>
    %cst_74 = arith.constant dense<0.000000e+00> : vector<8x14xf32>
    %168 = tpu.matmul %13, %163, %cst_74 {dimension_numbers = #tpu.dot_dimension_numbers<[1], [0], [0], [1], [0, 0, 1, 1], [], []>} : vector<8x8xf32>, vector<8x14xf32>, vector<8x14xf32> -> vector<8x14xf32>
    %cst_75 = arith.constant dense<0.000000e+00> : vector<8x14xf32>
    %169 = tpu.matmul %13, %168, %cst_75 {dimension_numbers = #tpu.dot_dimension_numbers<[1], [0], [0], [1], [0, 0, 1, 1], [], []>} : vector<8x8xf32>, vector<8x14xf32>, vector<8x14xf32> -> vector<8x14xf32>
    %170 = tpu.concatenate %163, %168, %169 in 1 : vector<8x14xf32>, vector<8x14xf32>, vector<8x14xf32> -> vector<8x42xf32>
    %c0_76 = arith.constant 0 : index
    %c0_77 = arith.constant 0 : index
    %171 = vector.load %arg12[%c0_76, %c0_77] : memref<42x14xf32, #tpu.memory_space<vmem>>, vector<42x14xf32>
    %cst_78 = arith.constant dense<0.000000e+00> : vector<8x14xf32>
    %172 = tpu.matmul %170, %171, %cst_78 {dimension_numbers = #tpu.dot_dimension_numbers<[1], [0], [0], [1], [0, 0, 1, 1], [], []>} : vector<8x42xf32>, vector<42x14xf32>, vector<8x14xf32> -> vector<8x14xf32>
    %c0_79 = arith.constant 0 : index
    %c0_80 = arith.constant 0 : index
    %173 = vector.load %arg13[%c0_79, %c0_80] : memref<1x14xf32, #tpu.memory_space<vmem>>, vector<1x14xf32>
    %174 = vector.broadcast %173 : vector<1x14xf32> to vector<8x14xf32>
    %175 = arith.addf %172, %174 : vector<8x14xf32>
    %176 = arith.addf %175, %146 : vector<8x14xf32>
    %c3_81 = arith.constant 3 : index
    %c0_82 = arith.constant 0 : index
    %177 = memref.load %arg5[%c3_81, %c0_82] : memref<8x2xf32, #tpu.memory_space<smem>>
    %178 = vector.broadcast %177 : f32 to vector<8x14xf32>
    %179 = arith.mulf %176, %178 : vector<8x14xf32>
    %c3_83 = arith.constant 3 : index
    %c1_84 = arith.constant 1 : index
    %180 = memref.load %arg5[%c3_83, %c1_84] : memref<8x2xf32, #tpu.memory_space<smem>>
    %181 = vector.broadcast %180 : f32 to vector<8x14xf32>
    %182 = arith.addf %179, %181 : vector<8x14xf32>
    %183 = vector.extract_strided_slice %182 {offsets = [0, 0], sizes = [8, 6], strides = [1, 1]} : vector<8x14xf32> to vector<8x6xf32>
    %184 = vector.extract_strided_slice %182 {offsets = [0, 7], sizes = [8, 6], strides = [1, 1]} : vector<8x14xf32> to vector<8x6xf32>
    %185 = tpu.concatenate %183, %184 in 1 : vector<8x6xf32>, vector<8x6xf32> -> vector<8x12xf32>
    %186 = vector.extract_strided_slice %182 {offsets = [0, 1], sizes = [8, 6], strides = [1, 1]} : vector<8x14xf32> to vector<8x6xf32>
    %187 = vector.extract_strided_slice %182 {offsets = [0, 8], sizes = [8, 6], strides = [1, 1]} : vector<8x14xf32> to vector<8x6xf32>
    %188 = tpu.concatenate %186, %187 in 1 : vector<8x6xf32>, vector<8x6xf32> -> vector<8x12xf32>
    %189 = tpu.concatenate %185, %188 in 0 : vector<8x12xf32>, vector<8x12xf32> -> vector<16x12xf32>
    %c4 = arith.constant 4 : index
    %c0_85 = arith.constant 0 : index
    %c0_86 = arith.constant 0 : index
    %190 = vector.load %arg3[%c4, %c0_85, %c0_86] : memref<8x16x16xf32, #tpu.memory_space<vmem>>, vector<1x16x16xf32>
    %191 = vector.shape_cast %190 : vector<1x16x16xf32> to vector<16x16xf32>
    %cst_87 = arith.constant dense<0.000000e+00> : vector<16x12xf32>
    %192 = tpu.matmul %191, %189, %cst_87 {dimension_numbers = #tpu.dot_dimension_numbers<[1], [0], [0], [1], [0, 0, 1, 1], [], []>} : vector<16x16xf32>, vector<16x12xf32>, vector<16x12xf32> -> vector<16x12xf32>
    %c4_88 = arith.constant 4 : index
    %c0_89 = arith.constant 0 : index
    %c0_90 = arith.constant 0 : index
    %193 = vector.load %arg4[%c4_88, %c0_89, %c0_90] : memref<8x16x1xf32, #tpu.memory_space<vmem>>, vector<1x16x1xf32>
    %194 = vector.shape_cast %193 : vector<1x16x1xf32> to vector<16x1xf32>
    %195 = vector.broadcast %194 : vector<16x1xf32> to vector<16x12xf32>
    %196 = arith.addf %192, %195 : vector<16x12xf32>
    %197 = vector.extract_strided_slice %196 {offsets = [0, 0], sizes = [8, 12], strides = [1, 1]} : vector<16x12xf32> to vector<8x12xf32>
    %198 = math.tanh %197 : vector<8x12xf32>
    %199 = vector.extract_strided_slice %196 {offsets = [8, 0], sizes = [8, 12], strides = [1, 1]} : vector<16x12xf32> to vector<8x12xf32>
    %200 = arith.negf %199 : vector<8x12xf32>
    %201 = math.exp %200 : vector<8x12xf32>
    %cst_91 = arith.constant 1.000000e+00 : f32
    %202 = vector.broadcast %cst_91 : f32 to vector<8x12xf32>
    %203 = arith.addf %202, %201 : vector<8x12xf32>
    %204 = arith.divf %202, %203 : vector<8x12xf32>
    %205 = arith.mulf %198, %204 : vector<8x12xf32>
    %206 = vector.extract_strided_slice %167 {offsets = [0, 1], sizes = [8, 6], strides = [1, 1]} : vector<8x14xf32> to vector<8x6xf32>
    %207 = vector.extract_strided_slice %167 {offsets = [0, 8], sizes = [8, 6], strides = [1, 1]} : vector<8x14xf32> to vector<8x6xf32>
    %208 = tpu.concatenate %206, %207 in 1 : vector<8x6xf32>, vector<8x6xf32> -> vector<8x12xf32>
    %209 = arith.addf %205, %208 : vector<8x12xf32>
    %cst_92 = arith.constant dense<0.000000e+00> : vector<8x12xf32>
    %210 = tpu.matmul %13, %205, %cst_92 {dimension_numbers = #tpu.dot_dimension_numbers<[1], [0], [0], [1], [0, 0, 1, 1], [], []>} : vector<8x8xf32>, vector<8x12xf32>, vector<8x12xf32> -> vector<8x12xf32>
    %cst_93 = arith.constant dense<0.000000e+00> : vector<8x12xf32>
    %211 = tpu.matmul %13, %210, %cst_93 {dimension_numbers = #tpu.dot_dimension_numbers<[1], [0], [0], [1], [0, 0, 1, 1], [], []>} : vector<8x8xf32>, vector<8x12xf32>, vector<8x12xf32> -> vector<8x12xf32>
    %212 = tpu.concatenate %205, %210, %211 in 1 : vector<8x12xf32>, vector<8x12xf32>, vector<8x12xf32> -> vector<8x36xf32>
    %c0_94 = arith.constant 0 : index
    %c0_95 = arith.constant 0 : index
    %213 = vector.load %arg14[%c0_94, %c0_95] : memref<36x12xf32, #tpu.memory_space<vmem>>, vector<36x12xf32>
    %cst_96 = arith.constant dense<0.000000e+00> : vector<8x12xf32>
    %214 = tpu.matmul %212, %213, %cst_96 {dimension_numbers = #tpu.dot_dimension_numbers<[1], [0], [0], [1], [0, 0, 1, 1], [], []>} : vector<8x36xf32>, vector<36x12xf32>, vector<8x12xf32> -> vector<8x12xf32>
    %c0_97 = arith.constant 0 : index
    %c0_98 = arith.constant 0 : index
    %215 = vector.load %arg15[%c0_97, %c0_98] : memref<1x12xf32, #tpu.memory_space<vmem>>, vector<1x12xf32>
    %216 = vector.broadcast %215 : vector<1x12xf32> to vector<8x12xf32>
    %217 = arith.addf %214, %216 : vector<8x12xf32>
    %218 = arith.addf %217, %188 : vector<8x12xf32>
    %c4_99 = arith.constant 4 : index
    %c0_100 = arith.constant 0 : index
    %219 = memref.load %arg5[%c4_99, %c0_100] : memref<8x2xf32, #tpu.memory_space<smem>>
    %220 = vector.broadcast %219 : f32 to vector<8x12xf32>
    %221 = arith.mulf %218, %220 : vector<8x12xf32>
    %c4_101 = arith.constant 4 : index
    %c1_102 = arith.constant 1 : index
    %222 = memref.load %arg5[%c4_101, %c1_102] : memref<8x2xf32, #tpu.memory_space<smem>>
    %223 = vector.broadcast %222 : f32 to vector<8x12xf32>
    %224 = arith.addf %221, %223 : vector<8x12xf32>
    %225 = vector.extract_strided_slice %224 {offsets = [0, 0], sizes = [8, 4], strides = [1, 1]} : vector<8x12xf32> to vector<8x4xf32>
    %226 = vector.extract_strided_slice %224 {offsets = [0, 6], sizes = [8, 4], strides = [1, 1]} : vector<8x12xf32> to vector<8x4xf32>
    %227 = tpu.concatenate %225, %226 in 1 : vector<8x4xf32>, vector<8x4xf32> -> vector<8x8xf32>
    %228 = vector.extract_strided_slice %224 {offsets = [0, 2], sizes = [8, 4], strides = [1, 1]} : vector<8x12xf32> to vector<8x4xf32>
    %229 = vector.extract_strided_slice %224 {offsets = [0, 8], sizes = [8, 4], strides = [1, 1]} : vector<8x12xf32> to vector<8x4xf32>
    %230 = tpu.concatenate %228, %229 in 1 : vector<8x4xf32>, vector<8x4xf32> -> vector<8x8xf32>
    %231 = tpu.concatenate %227, %230 in 0 : vector<8x8xf32>, vector<8x8xf32> -> vector<16x8xf32>
    %c5 = arith.constant 5 : index
    %c0_103 = arith.constant 0 : index
    %c0_104 = arith.constant 0 : index
    %232 = vector.load %arg3[%c5, %c0_103, %c0_104] : memref<8x16x16xf32, #tpu.memory_space<vmem>>, vector<1x16x16xf32>
    %233 = vector.shape_cast %232 : vector<1x16x16xf32> to vector<16x16xf32>
    %cst_105 = arith.constant dense<0.000000e+00> : vector<16x8xf32>
    %234 = tpu.matmul %233, %231, %cst_105 {dimension_numbers = #tpu.dot_dimension_numbers<[1], [0], [0], [1], [0, 0, 1, 1], [], []>} : vector<16x16xf32>, vector<16x8xf32>, vector<16x8xf32> -> vector<16x8xf32>
    %c5_106 = arith.constant 5 : index
    %c0_107 = arith.constant 0 : index
    %c0_108 = arith.constant 0 : index
    %235 = vector.load %arg4[%c5_106, %c0_107, %c0_108] : memref<8x16x1xf32, #tpu.memory_space<vmem>>, vector<1x16x1xf32>
    %236 = vector.shape_cast %235 : vector<1x16x1xf32> to vector<16x1xf32>
    %237 = vector.broadcast %236 : vector<16x1xf32> to vector<16x8xf32>
    %238 = arith.addf %234, %237 : vector<16x8xf32>
    %239 = vector.extract_strided_slice %238 {offsets = [0, 0], sizes = [8, 8], strides = [1, 1]} : vector<16x8xf32> to vector<8x8xf32>
    %240 = math.tanh %239 : vector<8x8xf32>
    %241 = vector.extract_strided_slice %238 {offsets = [8, 0], sizes = [8, 8], strides = [1, 1]} : vector<16x8xf32> to vector<8x8xf32>
    %242 = arith.negf %241 : vector<8x8xf32>
    %243 = math.exp %242 : vector<8x8xf32>
    %cst_109 = arith.constant 1.000000e+00 : f32
    %244 = vector.broadcast %cst_109 : f32 to vector<8x8xf32>
    %245 = arith.addf %244, %243 : vector<8x8xf32>
    %246 = arith.divf %244, %245 : vector<8x8xf32>
    %247 = arith.mulf %240, %246 : vector<8x8xf32>
    %248 = vector.extract_strided_slice %209 {offsets = [0, 2], sizes = [8, 4], strides = [1, 1]} : vector<8x12xf32> to vector<8x4xf32>
    %249 = vector.extract_strided_slice %209 {offsets = [0, 8], sizes = [8, 4], strides = [1, 1]} : vector<8x12xf32> to vector<8x4xf32>
    %250 = tpu.concatenate %248, %249 in 1 : vector<8x4xf32>, vector<8x4xf32> -> vector<8x8xf32>
    %251 = arith.addf %247, %250 : vector<8x8xf32>
    %cst_110 = arith.constant dense<0.000000e+00> : vector<8x8xf32>
    %252 = tpu.matmul %13, %247, %cst_110 {dimension_numbers = #tpu.dot_dimension_numbers<[1], [0], [0], [1], [0, 0, 1, 1], [], []>} : vector<8x8xf32>, vector<8x8xf32>, vector<8x8xf32> -> vector<8x8xf32>
    %cst_111 = arith.constant dense<0.000000e+00> : vector<8x8xf32>
    %253 = tpu.matmul %13, %252, %cst_111 {dimension_numbers = #tpu.dot_dimension_numbers<[1], [0], [0], [1], [0, 0, 1, 1], [], []>} : vector<8x8xf32>, vector<8x8xf32>, vector<8x8xf32> -> vector<8x8xf32>
    %254 = tpu.concatenate %247, %252, %253 in 1 : vector<8x8xf32>, vector<8x8xf32>, vector<8x8xf32> -> vector<8x24xf32>
    %c0_112 = arith.constant 0 : index
    %c0_113 = arith.constant 0 : index
    %255 = vector.load %arg16[%c0_112, %c0_113] : memref<24x8xf32, #tpu.memory_space<vmem>>, vector<24x8xf32>
    %cst_114 = arith.constant dense<0.000000e+00> : vector<8x8xf32>
    %256 = tpu.matmul %254, %255, %cst_114 {dimension_numbers = #tpu.dot_dimension_numbers<[1], [0], [0], [1], [0, 0, 1, 1], [], []>} : vector<8x24xf32>, vector<24x8xf32>, vector<8x8xf32> -> vector<8x8xf32>
    %c0_115 = arith.constant 0 : index
    %c0_116 = arith.constant 0 : index
    %257 = vector.load %arg17[%c0_115, %c0_116] : memref<1x8xf32, #tpu.memory_space<vmem>>, vector<1x8xf32>
    %258 = vector.broadcast %257 : vector<1x8xf32> to vector<8x8xf32>
    %259 = arith.addf %256, %258 : vector<8x8xf32>
    %260 = arith.addf %259, %230 : vector<8x8xf32>
    %c5_117 = arith.constant 5 : index
    %c0_118 = arith.constant 0 : index
    %261 = memref.load %arg5[%c5_117, %c0_118] : memref<8x2xf32, #tpu.memory_space<smem>>
    %262 = vector.broadcast %261 : f32 to vector<8x8xf32>
    %263 = arith.mulf %260, %262 : vector<8x8xf32>
    %c5_119 = arith.constant 5 : index
    %c1_120 = arith.constant 1 : index
    %264 = memref.load %arg5[%c5_119, %c1_120] : memref<8x2xf32, #tpu.memory_space<smem>>
    %265 = vector.broadcast %264 : f32 to vector<8x8xf32>
    %266 = arith.addf %263, %265 : vector<8x8xf32>
    %267 = vector.extract_strided_slice %266 {offsets = [0, 0], sizes = [8, 3], strides = [1, 1]} : vector<8x8xf32> to vector<8x3xf32>
    %268 = vector.extract_strided_slice %266 {offsets = [0, 4], sizes = [8, 3], strides = [1, 1]} : vector<8x8xf32> to vector<8x3xf32>
    %269 = tpu.concatenate %267, %268 in 1 : vector<8x3xf32>, vector<8x3xf32> -> vector<8x6xf32>
    %270 = vector.extract_strided_slice %266 {offsets = [0, 1], sizes = [8, 3], strides = [1, 1]} : vector<8x8xf32> to vector<8x3xf32>
    %271 = vector.extract_strided_slice %266 {offsets = [0, 5], sizes = [8, 3], strides = [1, 1]} : vector<8x8xf32> to vector<8x3xf32>
    %272 = tpu.concatenate %270, %271 in 1 : vector<8x3xf32>, vector<8x3xf32> -> vector<8x6xf32>
    %273 = tpu.concatenate %269, %272 in 0 : vector<8x6xf32>, vector<8x6xf32> -> vector<16x6xf32>
    %c6 = arith.constant 6 : index
    %c0_121 = arith.constant 0 : index
    %c0_122 = arith.constant 0 : index
    %274 = vector.load %arg3[%c6, %c0_121, %c0_122] : memref<8x16x16xf32, #tpu.memory_space<vmem>>, vector<1x16x16xf32>
    %275 = vector.shape_cast %274 : vector<1x16x16xf32> to vector<16x16xf32>
    %cst_123 = arith.constant dense<0.000000e+00> : vector<16x6xf32>
    %276 = tpu.matmul %275, %273, %cst_123 {dimension_numbers = #tpu.dot_dimension_numbers<[1], [0], [0], [1], [0, 0, 1, 1], [], []>} : vector<16x16xf32>, vector<16x6xf32>, vector<16x6xf32> -> vector<16x6xf32>
    %c6_124 = arith.constant 6 : index
    %c0_125 = arith.constant 0 : index
    %c0_126 = arith.constant 0 : index
    %277 = vector.load %arg4[%c6_124, %c0_125, %c0_126] : memref<8x16x1xf32, #tpu.memory_space<vmem>>, vector<1x16x1xf32>
    %278 = vector.shape_cast %277 : vector<1x16x1xf32> to vector<16x1xf32>
    %279 = vector.broadcast %278 : vector<16x1xf32> to vector<16x6xf32>
    %280 = arith.addf %276, %279 : vector<16x6xf32>
    %281 = vector.extract_strided_slice %280 {offsets = [0, 0], sizes = [8, 6], strides = [1, 1]} : vector<16x6xf32> to vector<8x6xf32>
    %282 = math.tanh %281 : vector<8x6xf32>
    %283 = vector.extract_strided_slice %280 {offsets = [8, 0], sizes = [8, 6], strides = [1, 1]} : vector<16x6xf32> to vector<8x6xf32>
    %284 = arith.negf %283 : vector<8x6xf32>
    %285 = math.exp %284 : vector<8x6xf32>
    %cst_127 = arith.constant 1.000000e+00 : f32
    %286 = vector.broadcast %cst_127 : f32 to vector<8x6xf32>
    %287 = arith.addf %286, %285 : vector<8x6xf32>
    %288 = arith.divf %286, %287 : vector<8x6xf32>
    %289 = arith.mulf %282, %288 : vector<8x6xf32>
    %290 = vector.extract_strided_slice %251 {offsets = [0, 1], sizes = [8, 3], strides = [1, 1]} : vector<8x8xf32> to vector<8x3xf32>
    %291 = vector.extract_strided_slice %251 {offsets = [0, 5], sizes = [8, 3], strides = [1, 1]} : vector<8x8xf32> to vector<8x3xf32>
    %292 = tpu.concatenate %290, %291 in 1 : vector<8x3xf32>, vector<8x3xf32> -> vector<8x6xf32>
    %293 = arith.addf %289, %292 : vector<8x6xf32>
    %cst_128 = arith.constant dense<0.000000e+00> : vector<8x6xf32>
    %294 = tpu.matmul %13, %289, %cst_128 {dimension_numbers = #tpu.dot_dimension_numbers<[1], [0], [0], [1], [0, 0, 1, 1], [], []>} : vector<8x8xf32>, vector<8x6xf32>, vector<8x6xf32> -> vector<8x6xf32>
    %cst_129 = arith.constant dense<0.000000e+00> : vector<8x6xf32>
    %295 = tpu.matmul %13, %294, %cst_129 {dimension_numbers = #tpu.dot_dimension_numbers<[1], [0], [0], [1], [0, 0, 1, 1], [], []>} : vector<8x8xf32>, vector<8x6xf32>, vector<8x6xf32> -> vector<8x6xf32>
    %296 = tpu.concatenate %289, %294, %295 in 1 : vector<8x6xf32>, vector<8x6xf32>, vector<8x6xf32> -> vector<8x18xf32>
    %c0_130 = arith.constant 0 : index
    %c0_131 = arith.constant 0 : index
    %297 = vector.load %arg18[%c0_130, %c0_131] : memref<18x6xf32, #tpu.memory_space<vmem>>, vector<18x6xf32>
    %cst_132 = arith.constant dense<0.000000e+00> : vector<8x6xf32>
    %298 = tpu.matmul %296, %297, %cst_132 {dimension_numbers = #tpu.dot_dimension_numbers<[1], [0], [0], [1], [0, 0, 1, 1], [], []>} : vector<8x18xf32>, vector<18x6xf32>, vector<8x6xf32> -> vector<8x6xf32>
    %c0_133 = arith.constant 0 : index
    %c0_134 = arith.constant 0 : index
    %299 = vector.load %arg19[%c0_133, %c0_134] : memref<1x6xf32, #tpu.memory_space<vmem>>, vector<1x6xf32>
    %300 = vector.broadcast %299 : vector<1x6xf32> to vector<8x6xf32>
    %301 = arith.addf %298, %300 : vector<8x6xf32>
    %302 = arith.addf %301, %272 : vector<8x6xf32>
    %c6_135 = arith.constant 6 : index
    %c0_136 = arith.constant 0 : index
    %303 = memref.load %arg5[%c6_135, %c0_136] : memref<8x2xf32, #tpu.memory_space<smem>>
    %304 = vector.broadcast %303 : f32 to vector<8x6xf32>
    %305 = arith.mulf %302, %304 : vector<8x6xf32>
    %c6_137 = arith.constant 6 : index
    %c1_138 = arith.constant 1 : index
    %306 = memref.load %arg5[%c6_137, %c1_138] : memref<8x2xf32, #tpu.memory_space<smem>>
    %307 = vector.broadcast %306 : f32 to vector<8x6xf32>
    %308 = arith.addf %305, %307 : vector<8x6xf32>
    %309 = vector.extract_strided_slice %308 {offsets = [0, 0], sizes = [8, 1], strides = [1, 1]} : vector<8x6xf32> to vector<8x1xf32>
    %310 = vector.extract_strided_slice %308 {offsets = [0, 3], sizes = [8, 1], strides = [1, 1]} : vector<8x6xf32> to vector<8x1xf32>
    %311 = tpu.concatenate %309, %310 in 1 : vector<8x1xf32>, vector<8x1xf32> -> vector<8x2xf32>
    %312 = vector.extract_strided_slice %308 {offsets = [0, 2], sizes = [8, 1], strides = [1, 1]} : vector<8x6xf32> to vector<8x1xf32>
    %313 = vector.extract_strided_slice %308 {offsets = [0, 5], sizes = [8, 1], strides = [1, 1]} : vector<8x6xf32> to vector<8x1xf32>
    %314 = tpu.concatenate %312, %313 in 1 : vector<8x1xf32>, vector<8x1xf32> -> vector<8x2xf32>
    %315 = tpu.concatenate %311, %314 in 0 : vector<8x2xf32>, vector<8x2xf32> -> vector<16x2xf32>
    %c7 = arith.constant 7 : index
    %c0_139 = arith.constant 0 : index
    %c0_140 = arith.constant 0 : index
    %316 = vector.load %arg3[%c7, %c0_139, %c0_140] : memref<8x16x16xf32, #tpu.memory_space<vmem>>, vector<1x16x16xf32>
    %317 = vector.shape_cast %316 : vector<1x16x16xf32> to vector<16x16xf32>
    %cst_141 = arith.constant dense<0.000000e+00> : vector<16x2xf32>
    %318 = tpu.matmul %317, %315, %cst_141 {dimension_numbers = #tpu.dot_dimension_numbers<[1], [0], [0], [1], [0, 0, 1, 1], [], []>} : vector<16x16xf32>, vector<16x2xf32>, vector<16x2xf32> -> vector<16x2xf32>
    %c7_142 = arith.constant 7 : index
    %c0_143 = arith.constant 0 : index
    %c0_144 = arith.constant 0 : index
    %319 = vector.load %arg4[%c7_142, %c0_143, %c0_144] : memref<8x16x1xf32, #tpu.memory_space<vmem>>, vector<1x16x1xf32>
    %320 = vector.shape_cast %319 : vector<1x16x1xf32> to vector<16x1xf32>
    %321 = vector.broadcast %320 : vector<16x1xf32> to vector<16x2xf32>
    %322 = arith.addf %318, %321 : vector<16x2xf32>
    %323 = vector.extract_strided_slice %322 {offsets = [0, 0], sizes = [8, 2], strides = [1, 1]} : vector<16x2xf32> to vector<8x2xf32>
    %324 = math.tanh %323 : vector<8x2xf32>
    %325 = vector.extract_strided_slice %322 {offsets = [8, 0], sizes = [8, 2], strides = [1, 1]} : vector<16x2xf32> to vector<8x2xf32>
    %326 = arith.negf %325 : vector<8x2xf32>
    %327 = math.exp %326 : vector<8x2xf32>
    %cst_145 = arith.constant 1.000000e+00 : f32
    %328 = vector.broadcast %cst_145 : f32 to vector<8x2xf32>
    %329 = arith.addf %328, %327 : vector<8x2xf32>
    %330 = arith.divf %328, %329 : vector<8x2xf32>
    %331 = arith.mulf %324, %330 : vector<8x2xf32>
    %332 = vector.extract_strided_slice %293 {offsets = [0, 2], sizes = [8, 1], strides = [1, 1]} : vector<8x6xf32> to vector<8x1xf32>
    %333 = vector.extract_strided_slice %293 {offsets = [0, 5], sizes = [8, 1], strides = [1, 1]} : vector<8x6xf32> to vector<8x1xf32>
    %334 = tpu.concatenate %332, %333 in 1 : vector<8x1xf32>, vector<8x1xf32> -> vector<8x2xf32>
    %335 = arith.addf %331, %334 : vector<8x2xf32>
    %cst_146 = arith.constant 0.000000e+00 : f32
    %336 = vector.broadcast %cst_146 : f32 to vector<8x2xf32>
    %337 = arith.maximumf %335, %336 : vector<8x2xf32>
    %338 = vector.extract_strided_slice %337 {offsets = [0, 0], sizes = [8, 1], strides = [1, 1]} : vector<8x2xf32> to vector<8x1xf32>
    %c0_147 = arith.constant 0 : index
    %c0_148 = arith.constant 0 : index
    %339 = vector.load %arg22[%c0_147, %c0_148] : memref<1x3xf32, #tpu.memory_space<vmem>>, vector<1x3xf32>
    %340 = vector.broadcast %338 : vector<8x1xf32> to vector<8x3xf32>
    %341 = vector.broadcast %339 : vector<1x3xf32> to vector<8x3xf32>
    %342 = arith.mulf %340, %341 : vector<8x3xf32>
    %c0_149 = arith.constant 0 : index
    %c0_150 = arith.constant 0 : index
    %343 = vector.load %arg23[%c0_149, %c0_150] : memref<1x3xf32, #tpu.memory_space<vmem>>, vector<1x3xf32>
    %344 = vector.broadcast %343 : vector<1x3xf32> to vector<8x3xf32>
    %345 = arith.addf %342, %344 : vector<8x3xf32>
    %346 = vector.extract_strided_slice %337 {offsets = [0, 1], sizes = [8, 1], strides = [1, 1]} : vector<8x2xf32> to vector<8x1xf32>
    %c0_151 = arith.constant 0 : index
    %c0_152 = arith.constant 0 : index
    %347 = vector.load %arg22[%c0_151, %c0_152] : memref<1x3xf32, #tpu.memory_space<vmem>>, vector<1x3xf32>
    %348 = vector.broadcast %346 : vector<8x1xf32> to vector<8x3xf32>
    %349 = vector.broadcast %347 : vector<1x3xf32> to vector<8x3xf32>
    %350 = arith.mulf %348, %349 : vector<8x3xf32>
    %c0_153 = arith.constant 0 : index
    %c0_154 = arith.constant 0 : index
    %351 = vector.load %arg23[%c0_153, %c0_154] : memref<1x3xf32, #tpu.memory_space<vmem>>, vector<1x3xf32>
    %352 = vector.broadcast %351 : vector<1x3xf32> to vector<8x3xf32>
    %353 = arith.addf %350, %352 : vector<8x3xf32>
    %354 = tpu.concatenate %345, %353 in 1 : vector<8x3xf32>, vector<8x3xf32> -> vector<8x6xf32>
    %c0_155 = arith.constant 0 : index
    %c0_156 = arith.constant 0 : index
    %355 = vector.load %arg24[%c0_155, %c0_156] : memref<8x6xf32, #tpu.memory_space<vmem>>, vector<8x6xf32>
    tpu.vector_store %arg24[%c0_155, %c0_156], %354 {strides = array<i32>} : memref<8x6xf32, #tpu.memory_space<vmem>>, vector<8x6xf32>,
    return
  }
}

</mosaic_0001>

<llo_original>
// kernel: _lambda_.1
$region0: #{_lambda_.1}
  #allocation0 [shape = 'u32[]', space=smem, size = 0x4, offset = 0x4, fixed_abs, tag = 'smem constant byte address 0x4 - core index']
  #allocation1 [shape = 'u32[72,128]{1,0:T(1,128)}', space=vmem, size = 0x9000, scoped, tag = 'internal scratch']
  %s0 = inlined_call_operand.vmem [shape: f32[2,8,13], index: 0, kind: input, shape index: {}]
  %s1 = inlined_call_operand.hbm [shape: f32[8,10], index: 1, kind: input, shape index: {}]
  %s2 = inlined_call_operand.hbm [shape: f32[10,8], index: 2, kind: input, shape index: {}]
  %s3 = inlined_call_operand.hbm [shape: f32[8,16,16], index: 3, kind: input, shape index: {}]
  %s4 = inlined_call_operand.hbm [shape: f32[8,16,1], index: 4, kind: input, shape index: {}]
  %s5 = inlined_call_operand.hbm [shape: f32[8,2], index: 5, kind: input, shape index: {}]
  %s6 = inlined_call_operand.hbm [shape: f32[72,24], index: 6, kind: input, shape index: {}]
  %s7 = inlined_call_operand.hbm [shape: f32[1,24], index: 7, kind: input, shape index: {}]
  %s8 = inlined_call_operand.hbm [shape: f32[60,20], index: 8, kind: input, shape index: {}]
  %s9 = inlined_call_operand.hbm [shape: f32[1,20], index: 9, kind: input, shape index: {}]
  %s10 = inlined_call_operand.hbm [shape: f32[54,18], index: 10, kind: input, shape index: {}]
  %s11 = inlined_call_operand.hbm [shape: f32[1,18], index: 11, kind: input, shape index: {}]
  %s12 = inlined_call_operand.hbm [shape: f32[42,14], index: 12, kind: input, shape index: {}]
  %s13 = inlined_call_operand.hbm [shape: f32[1,14], index: 13, kind: input, shape index: {}]
  %s14 = inlined_call_operand.vmem [shape: f32[36,12], index: 14, kind: input, shape index: {}]
  %s15 = inlined_call_operand.hbm [shape: f32[1,12], index: 15, kind: input, shape index: {}]
  %s16 = inlined_call_operand.hbm [shape: f32[24,8], index: 16, kind: input, shape index: {}]
  %s17 = inlined_call_operand.vmem [shape: f32[1,8], index: 17, kind: input, shape index: {}]
  %s18 = inlined_call_operand.hbm [shape: f32[18,6], index: 18, kind: input, shape index: {}]
  %s19 = inlined_call_operand.vmem [shape: f32[1,6], index: 19, kind: input, shape index: {}]
  %s20 = inlined_call_operand.vmem [shape: f32[6,2], index: 20, kind: input, shape index: {}]
  %s21 = inlined_call_operand.vmem [shape: f32[1,2], index: 21, kind: input, shape index: {}]
  %s22 = inlined_call_operand.vmem [shape: f32[1,3], index: 22, kind: input, shape index: {}]
  %s23 = inlined_call_operand.vmem [shape: f32[1,3], index: 23, kind: input, shape index: {}]
  %s24 = inlined_call_operand.vmem [shape: f32[8,6], index: 24, kind: output, shape index: {}]
  %s25 = sld [smem:[#allocation0]]
  $region170: #{_lambda_.1} parent=0
    _
  %s27 = ssub.s32 1, %s25
  %s28 = scalar_select 0, %s27, %s25
  $region1: #{_lambda_.1} parent=0
    #allocation2 [shape = 'u8[4096]{0}', space=vmem, size = 0x1000, scoped, tag = 'input window, operand 1, single buffered']
    #allocation3 [shape = 's32[1]{0}', space=sflag, size = 0x4, scoped, tag = 'scoped memory for _lambda_.1']
    #allocation4 [shape = 's32[1]{0}', space=sflag, size = 0x4, scoped, tag = 'scoped memory for _lambda_.1']
    #allocation5 [shape = 'u8[8192]{0}', space=vmem, size = 0x2000, scoped, tag = 'input window, operand 2, single buffered']
    #allocation6 [shape = 's32[1]{0}', space=sflag, size = 0x4, scoped, tag = 'scoped memory for _lambda_.1']
    #allocation7 [shape = 'u8[65536]{0}', space=vmem, size = 0x10000, scoped, tag = 'input window, operand 3, single buffered']
    #allocation8 [shape = 'u8[65536]{0}', space=vmem, size = 0x10000, scoped, tag = 'input window, operand 4, single buffered']
    #allocation9 [shape = 's32[1]{0}', space=sflag, size = 0x4, scoped, tag = 'scoped memory for _lambda_.1']
    #allocation10 [shape = 'u8[4096]{0}', space=smem, size = 0x1000, scoped, tag = 'input window, operand 5, single buffered']
    #allocation11 [shape = 'u8[36864]{0}', space=vmem, size = 0x9000, scoped, tag = 'input window, operand 6, single buffered']
    #allocation12 [shape = 'u8[512]{0}', space=vmem, size = 0x400, scoped, tag = 'input window, operand 7, single buffered']
    #allocation13 [shape = 's32[1]{0}', space=sflag, size = 0x4, scoped, tag = 'scoped memory for _lambda_.1']
    #allocation14 [shape = 'u8[32768]{0}', space=vmem, size = 0x8000, scoped, tag = 'input window, operand 8, single buffered']
    #allocation15 [shape = 'u8[512]{0}', space=vmem, size = 0x400, scoped, tag = 'input window, operand 9, single buffered']
    #allocation16 [shape = 's32[1]{0}', space=sflag, size = 0x4, scoped, tag = 'scoped memory for _lambda_.1']
    #allocation17 [shape = 'u8[28672]{0}', space=vmem, size = 0x7000, scoped, tag = 'input window, operand 10, single buffered']
    #allocation18 [shape = 'u8[512]{0}', space=vmem, size = 0x400, scoped, tag = 'input window, operand 11, single buffered']
    #allocation19 [shape = 's32[1]{0}', space=sflag, size = 0x4, scoped, tag = 'scoped memory for _lambda_.1']
    #allocation20 [shape = 'u8[24576]{0}', space=vmem, size = 0x6000, scoped, tag = 'input window, operand 12, single buffered']
    #allocation21 [shape = 'u8[512]{0}', space=vmem, size = 0x400, scoped, tag = 'input window, operand 13, single buffered']
    #allocation22 [shape = 's32[1]{0}', space=sflag, size = 0x4, scoped, tag = 'scoped memory for _lambda_.1']
    #allocation23 [shape = 'u8[512]{0}', space=vmem, size = 0x400, scoped, tag = 'input window, operand 15, single buffered']
    #allocation24 [shape = 'u8[12288]{0}', space=vmem, size = 0x3000, scoped, tag = 'input window, operand 16, single buffered']
    #allocation25 [shape = 's32[1]{0}', space=sflag, size = 0x4, scoped, tag = 'scoped memory for _lambda_.1']
    #allocation26 [shape = 'u8[12288]{0}', space=vmem, size = 0x3000, scoped, tag = 'input window, operand 18, single buffered']
    %29 = vsyncpa [#allocation3], 0
    %30 = vsyncpa [#allocation6], 0
    %31 = vsyncpa [#allocation9], 0
    %32 = vsyncpa [#allocation4], 0
    %33 = vsyncpa [#allocation13], 0
    %34 = vsyncpa [#allocation16], 0
    %35 = vsyncpa [#allocation19], 0
    %36 = vsyncpa [#allocation22], 0
    %37 = vsyncpa [#allocation25], 0
    // Predicated region
    $region2: #{_lambda_.1} parent=1 // pred_check
      _
    $region3: #{_lambda_.1} parent=1 // pred_check_branch
      %39 = sbr.rel (0) target = $region5
    $region4: #{_lambda_.1} parent=1 // pred_region
      _
    $region5: #{_lambda_.1} parent=1 // pred_fallthru
      _
    // Predicated region
    $region6: #{_lambda_.1} parent=1 // pred_check
      _
    $region7: #{_lambda_.1} parent=1 // pred_check_branch
      %41 = sbr.rel (0) target = $region9
    $region8: #{_lambda_.1} parent=1 // pred_region
      %43 = vsyncadd [#allocation3], 0
      %s45 = sshll.u32 %s1, 4
      %s46 = int_to_ptr.hbm [resolvable:$true] %s45
      %s47 = sshll.u32 [#allocation2], 4
      %s48 = int_to_ptr.vmem [resolvable:$true] %s47
      %50 = dma.hbm_to_vmem [thread:$0]  %s46, 128, %s48, [#allocation3]
    $region9: #{_lambda_.1} parent=1 // pred_fallthru
      _
    // Predicated region
    $region10: #{_lambda_.1} parent=1 // pred_check
      _
    $region11: #{_lambda_.1} parent=1 // pred_check_branch
      %52 = sbr.rel (0) target = $region13
    $region12: #{_lambda_.1} parent=1 // pred_region
      %54 = vsyncadd [#allocation6], 0
      %s55 = sshll.u32 %s2, 4
      %s56 = int_to_ptr.hbm [resolvable:$true] %s55
      %s57 = sshll.u32 [#allocation5], 4
      %s58 = int_to_ptr.vmem [resolvable:$true] %s57
      %63 = dma.hbm_to_vmem [thread:$0]  %s56, 256, %s58, [#allocation6], 128, 128, 8
    $region13: #{_lambda_.1} parent=1 // pred_fallthru
      _
    // Predicated region
    $region14: #{_lambda_.1} parent=1 // pred_check
      _
    $region15: #{_lambda_.1} parent=1 // pred_check_branch
      %65 = sbr.rel (0) target = $region17
    $region16: #{_lambda_.1} parent=1 // pred_region
      %67 = vsyncadd [#allocation6], 0
      %s68 = sshll.u32 %s3, 4
      %s69 = int_to_ptr.hbm [resolvable:$true] %s68
      %s70 = sshll.u32 [#allocation7], 4
      %s71 = int_to_ptr.vmem [resolvable:$true] %s70
      %76 = dma.hbm_to_vmem [thread:$0]  %s69, 2048, %s71, [#allocation6], 128, 128, 8
    $region17: #{_lambda_.1} parent=1 // pred_fallthru
      _
    // Predicated region
    $region18: #{_lambda_.1} parent=1 // pred_check
      _
    $region19: #{_lambda_.1} parent=1 // pred_check_branch
      %78 = sbr.rel (0) target = $region21
    $region20: #{_lambda_.1} parent=1 // pred_region
      %80 = vsyncadd [#allocation9], 0
      %s81 = sshll.u32 %s4, 4
      %s82 = int_to_ptr.hbm [resolvable:$true] %s81
      %s83 = sshll.u32 [#allocation8], 4
      %s84 = int_to_ptr.vmem [resolvable:$true] %s83
      %89 = dma.hbm_to_vmem [thread:$0]  %s82, 2048, %s84, [#allocation9], 128, 128, 8
    $region21: #{_lambda_.1} parent=1 // pred_fallthru
      _
    // Predicated region
    $region22: #{_lambda_.1} parent=1 // pred_check
      _
    $region23: #{_lambda_.1} parent=1 // pred_check_branch
      %91 = sbr.rel (0) target = $region25
    $region24: #{_lambda_.1} parent=1 // pred_region
      %93 = vsyncadd [#allocation4], 0
      %s95 = sshll.u32 %s5, 4
      %s96 = int_to_ptr.hbm [resolvable:$true] %s95
      %98 = dma.hbm_to_smem %s96, 128, [#allocation10], [#allocation4]
    $region25: #{_lambda_.1} parent=1 // pred_fallthru
      _
    // Predicated region
    $region26: #{_lambda_.1} parent=1 // pred_check
      _
    $region27: #{_lambda_.1} parent=1 // pred_check_branch
      %100 = sbr.rel (0) target = $region29
    $region28: #{_lambda_.1} parent=1 // pred_region
      %102 = vsyncadd [#allocation9], 0
      %s103 = sshll.u32 %s6, 4
      %s104 = int_to_ptr.hbm [resolvable:$true] %s103
      %s105 = sshll.u32 [#allocation11], 4
      %s106 = int_to_ptr.vmem [resolvable:$true] %s105
      %111 = dma.hbm_to_vmem [thread:$0]  %s104, 1152, %s106, [#allocation9], 128, 128, 8
    $region29: #{_lambda_.1} parent=1 // pred_fallthru
      _
    // Predicated region
    $region30: #{_lambda_.1} parent=1 // pred_check
      _
    $region31: #{_lambda_.1} parent=1 // pred_check_branch
      %113 = sbr.rel (0) target = $region33
    $region32: #{_lambda_.1} parent=1 // pred_region
      %115 = vsyncadd [#allocation13], 0
      %s117 = sshll.u32 %s7, 4
      %s118 = int_to_ptr.hbm [resolvable:$true] %s117
      %s119 = sshll.u32 [#allocation12], 4
      %s120 = int_to_ptr.vmem [resolvable:$true] %s119
      %122 = dma.hbm_to_vmem [thread:$0]  %s118, 16, %s120, [#allocation13]
    $region33: #{_lambda_.1} parent=1 // pred_fallthru
      _
    // Predicated region
    $region34: #{_lambda_.1} parent=1 // pred_check
      _
    $region35: #{_lambda_.1} parent=1 // pred_check_branch
      %124 = sbr.rel (0) target = $region37
    $region36: #{_lambda_.1} parent=1 // pred_region
      %126 = vsyncadd [#allocation13], 0
      %s127 = sshll.u32 %s8, 4
      %s128 = int_to_ptr.hbm [resolvable:$true] %s127
      %s129 = sshll.u32 [#allocation14], 4
      %s130 = int_to_ptr.vmem [resolvable:$true] %s129
      %135 = dma.hbm_to_vmem [thread:$0]  %s128, 1024, %s130, [#allocation13], 128, 128, 8
    $region37: #{_lambda_.1} parent=1 // pred_fallthru
      _
    // Predicated region
    $region38: #{_lambda_.1} parent=1 // pred_check
      _
    $region39: #{_lambda_.1} parent=1 // pred_check_branch
      %137 = sbr.rel (0) target = $region41
    $region40: #{_lambda_.1} parent=1 // pred_region
      %139 = vsyncadd [#allocation16], 0
      %s141 = sshll.u32 %s9, 4
      %s142 = int_to_ptr.hbm [resolvable:$true] %s141
      %s143 = sshll.u32 [#allocation15], 4
      %s144 = int_to_ptr.vmem [resolvable:$true] %s143
      %146 = dma.hbm_to_vmem [thread:$0]  %s142, 16, %s144, [#allocation16]
    $region41: #{_lambda_.1} parent=1 // pred_fallthru
      _
    // Predicated region
    $region42: #{_lambda_.1} parent=1 // pred_check
      _
    $region43: #{_lambda_.1} parent=1 // pred_check_branch
      %148 = sbr.rel (0) target = $region45
    $region44: #{_lambda_.1} parent=1 // pred_region
      %150 = vsyncadd [#allocation16], 0
      %s151 = sshll.u32 %s10, 4
      %s152 = int_to_ptr.hbm [resolvable:$true] %s151
      %s153 = sshll.u32 [#allocation17], 4
      %s154 = int_to_ptr.vmem [resolvable:$true] %s153
      %159 = dma.hbm_to_vmem [thread:$0]  %s152, 896, %s154, [#allocation16], 128, 128, 8
    $region45: #{_lambda_.1} parent=1 // pred_fallthru
      _
    // Predicated region
    $region46: #{_lambda_.1} parent=1 // pred_check
      _
    $region47: #{_lambda_.1} parent=1 // pred_check_branch
      %161 = sbr.rel (0) target = $region49
    $region48: #{_lambda_.1} parent=1 // pred_region
      %163 = vsyncadd [#allocation19], 0
      %s165 = sshll.u32 %s11, 4
      %s166 = int_to_ptr.hbm [resolvable:$true] %s165
      %s167 = sshll.u32 [#allocation18], 4
      %s168 = int_to_ptr.vmem [resolvable:$true] %s167
      %170 = dma.hbm_to_vmem [thread:$0]  %s166, 16, %s168, [#allocation19]
    $region49: #{_lambda_.1} parent=1 // pred_fallthru
      _
    // Predicated region
    $region50: #{_lambda_.1} parent=1 // pred_check
      _
    $region51: #{_lambda_.1} parent=1 // pred_check_branch
      %172 = sbr.rel (0) target = $region53
    $region52: #{_lambda_.1} parent=1 // pred_region
      %174 = vsyncadd [#allocation19], 0
      %s175 = sshll.u32 %s12, 4
      %s176 = int_to_ptr.hbm [resolvable:$true] %s175
      %s177 = sshll.u32 [#allocation20], 4
      %s178 = int_to_ptr.vmem [resolvable:$true] %s177
      %183 = dma.hbm_to_vmem [thread:$0]  %s176, 768, %s178, [#allocation19], 128, 128, 8
    $region53: #{_lambda_.1} parent=1 // pred_fallthru
      _
    // Predicated region
    $region54: #{_lambda_.1} parent=1 // pred_check
      _
    $region55: #{_lambda_.1} parent=1 // pred_check_branch
      %185 = sbr.rel (0) target = $region57
    $region56: #{_lambda_.1} parent=1 // pred_region
      %187 = vsyncadd [#allocation22], 0
      %s189 = sshll.u32 %s13, 4
      %s190 = int_to_ptr.hbm [resolvable:$true] %s189
      %s191 = sshll.u32 [#allocation21], 4
      %s192 = int_to_ptr.vmem [resolvable:$true] %s191
      %194 = dma.hbm_to_vmem [thread:$0]  %s190, 16, %s192, [#allocation22]
    $region57: #{_lambda_.1} parent=1 // pred_fallthru
      _
    // Predicated region
    $region58: #{_lambda_.1} parent=1 // pred_check
      _
    $region59: #{_lambda_.1} parent=1 // pred_check_branch
      %196 = sbr.rel (0) target = $region61
    $region60: #{_lambda_.1} parent=1 // pred_region
      _
    $region61: #{_lambda_.1} parent=1 // pred_fallthru
      _
    // Predicated region
    $region62: #{_lambda_.1} parent=1 // pred_check
      _
    $region63: #{_lambda_.1} parent=1 // pred_check_branch
      %198 = sbr.rel (0) target = $region65
    $region64: #{_lambda_.1} parent=1 // pred_region
      %200 = vsyncadd [#allocation22], 0
      %s202 = sshll.u32 %s15, 4
      %s203 = int_to_ptr.hbm [resolvable:$true] %s202
      %s204 = sshll.u32 [#allocation23], 4
      %s205 = int_to_ptr.vmem [resolvable:$true] %s204
      %207 = dma.hbm_to_vmem [thread:$0]  %s203, 16, %s205, [#allocation22]
    $region65: #{_lambda_.1} parent=1 // pred_fallthru
      _
    // Predicated region
    $region66: #{_lambda_.1} parent=1 // pred_check
      _
    $region67: #{_lambda_.1} parent=1 // pred_check_branch
      %209 = sbr.rel (0) target = $region69
    $region68: #{_lambda_.1} parent=1 // pred_region
      %211 = vsyncadd [#allocation25], 0
      %s212 = sshll.u32 %s16, 4
      %s213 = int_to_ptr.hbm [resolvable:$true] %s212
      %s214 = sshll.u32 [#allocation24], 4
      %s215 = int_to_ptr.vmem [resolvable:$true] %s214
      %220 = dma.hbm_to_vmem [thread:$0]  %s213, 384, %s215, [#allocation25], 128, 128, 8
    $region69: #{_lambda_.1} parent=1 // pred_fallthru
      _
    // Predicated region
    $region70: #{_lambda_.1} parent=1 // pred_check
      _
    $region71: #{_lambda_.1} parent=1 // pred_check_branch
      %222 = sbr.rel (0) target = $region73
    $region72: #{_lambda_.1} parent=1 // pred_region
      _
    $region73: #{_lambda_.1} parent=1 // pred_fallthru
      _
    // Predicated region
    $region74: #{_lambda_.1} parent=1 // pred_check
      _
    $region75: #{_lambda_.1} parent=1 // pred_check_branch
      %224 = sbr.rel (0) target = $region77
    $region76: #{_lambda_.1} parent=1 // pred_region
      %226 = vsyncadd [#allocation25], 0
      %s227 = sshll.u32 %s18, 4
      %s228 = int_to_ptr.hbm [resolvable:$true] %s227
      %s229 = sshll.u32 [#allocation26], 4
      %s230 = int_to_ptr.vmem [resolvable:$true] %s229
      %235 = dma.hbm_to_vmem [thread:$0]  %s228, 384, %s230, [#allocation25], 128, 128, 8
    $region77: #{_lambda_.1} parent=1 // pred_fallthru
      _
    // Predicated region
    $region78: #{_lambda_.1} parent=1 // pred_check
      _
    $region79: #{_lambda_.1} parent=1 // pred_check_branch
      %237 = sbr.rel (0) target = $region81
    $region80: #{_lambda_.1} parent=1 // pred_region
      _
    $region81: #{_lambda_.1} parent=1 // pred_fallthru
      _
    // Predicated region
    $region82: #{_lambda_.1} parent=1 // pred_check
      _
    $region83: #{_lambda_.1} parent=1 // pred_check_branch
      %239 = sbr.rel (0) target = $region85
    $region84: #{_lambda_.1} parent=1 // pred_region
      _
    $region85: #{_lambda_.1} parent=1 // pred_fallthru
      _
    // Predicated region
    $region86: #{_lambda_.1} parent=1 // pred_check
      _
    $region87: #{_lambda_.1} parent=1 // pred_check_branch
      %241 = sbr.rel (0) target = $region89
    $region88: #{_lambda_.1} parent=1 // pred_region
      _
    $region89: #{_lambda_.1} parent=1 // pred_fallthru
      _
    // Predicated region
    $region90: #{_lambda_.1} parent=1 // pred_check
      _
    $region91: #{_lambda_.1} parent=1 // pred_check_branch
      %243 = sbr.rel (0) target = $region93
    $region92: #{_lambda_.1} parent=1 // pred_region
      _
    $region93: #{_lambda_.1} parent=1 // pred_fallthru
      _
    // Predicated region
    $region94: #{_lambda_.1} parent=1 // pred_check
      _
    $region95: #{_lambda_.1} parent=1 // pred_check_branch
      %245 = sbr.rel (0) target = $region97
    $region96: #{_lambda_.1} parent=1 // pred_region
      _
    $region97: #{_lambda_.1} parent=1 // pred_fallthru
      _
    // Predicated region
    $region98: #{_lambda_.1} parent=1 // pred_check
      _
    $region99: #{_lambda_.1} parent=1 // pred_check_branch
      %247 = sbr.rel (0) target = $region101
    $region100: #{_lambda_.1} parent=1 // pred_region
      %249 = dma.done [#allocation3], 128
    $region101: #{_lambda_.1} parent=1 // pred_fallthru
      _
    // Predicated region
    $region102: #{_lambda_.1} parent=1 // pred_check
      _
    $region103: #{_lambda_.1} parent=1 // pred_check_branch
      %251 = sbr.rel (0) target = $region105
    $region104: #{_lambda_.1} parent=1 // pred_region
      %253 = dma.done [#allocation6], 256
    $region105: #{_lambda_.1} parent=1 // pred_fallthru
      _
    // Predicated region
    $region106: #{_lambda_.1} parent=1 // pred_check
      _
    $region107: #{_lambda_.1} parent=1 // pred_check_branch
      %255 = sbr.rel (0) target = $region109
    $region108: #{_lambda_.1} parent=1 // pred_region
      %257 = dma.done [#allocation6], 2048
    $region109: #{_lambda_.1} parent=1 // pred_fallthru
      _
    // Predicated region
    $region110: #{_lambda_.1} parent=1 // pred_check
      _
    $region111: #{_lambda_.1} parent=1 // pred_check_branch
      %259 = sbr.rel (0) target = $region113
    $region112: #{_lambda_.1} parent=1 // pred_region
      %261 = dma.done [#allocation9], 2048
    $region113: #{_lambda_.1} parent=1 // pred_fallthru
      _
    // Predicated region
    $region114: #{_lambda_.1} parent=1 // pred_check
      _
    $region115: #{_lambda_.1} parent=1 // pred_check_branch
      %263 = sbr.rel (0) target = $region117
    $region116: #{_lambda_.1} parent=1 // pred_region
      %265 = dma.done [#allocation4], 128
    $region117: #{_lambda_.1} parent=1 // pred_fallthru
      _
    // Predicated region
    $region118: #{_lambda_.1} parent=1 // pred_check
      _
    $region119: #{_lambda_.1} parent=1 // pred_check_branch
      %267 = sbr.rel (0) target = $region121
    $region120: #{_lambda_.1} parent=1 // pred_region
      %269 = dma.done [#allocation9], 1152
    $region121: #{_lambda_.1} parent=1 // pred_fallthru
      _
    // Predicated region
    $region122: #{_lambda_.1} parent=1 // pred_check
      _
    $region123: #{_lambda_.1} parent=1 // pred_check_branch
      %271 = sbr.rel (0) target = $region125
    $region124: #{_lambda_.1} parent=1 // pred_region
      %273 = dma.done [#allocation13], 16
    $region125: #{_lambda_.1} parent=1 // pred_fallthru
      _
    // Predicated region
    $region126: #{_lambda_.1} parent=1 // pred_check
      _
    $region127: #{_lambda_.1} parent=1 // pred_check_branch
      %275 = sbr.rel (0) target = $region129
    $region128: #{_lambda_.1} parent=1 // pred_region
      %277 = dma.done [#allocation13], 1024
    $region129: #{_lambda_.1} parent=1 // pred_fallthru
      _
    // Predicated region
    $region130: #{_lambda_.1} parent=1 // pred_check
      _
    $region131: #{_lambda_.1} parent=1 // pred_check_branch
      %279 = sbr.rel (0) target = $region133
    $region132: #{_lambda_.1} parent=1 // pred_region
      %281 = dma.done [#allocation16], 16
    $region133: #{_lambda_.1} parent=1 // pred_fallthru
      _
    // Predicated region
    $region134: #{_lambda_.1} parent=1 // pred_check
      _
    $region135: #{_lambda_.1} parent=1 // pred_check_branch
      %283 = sbr.rel (0) target = $region137
    $region136: #{_lambda_.1} parent=1 // pred_region
      %285 = dma.done [#allocation16], 896
    $region137: #{_lambda_.1} parent=1 // pred_fallthru
      _
    // Predicated region
    $region138: #{_lambda_.1} parent=1 // pred_check
      _
    $region139: #{_lambda_.1} parent=1 // pred_check_branch
      %287 = sbr.rel (0) target = $region141
    $region140: #{_lambda_.1} parent=1 // pred_region
      %289 = dma.done [#allocation19], 16
    $region141: #{_lambda_.1} parent=1 // pred_fallthru
      _
    // Predicated region
    $region142: #{_lambda_.1} parent=1 // pred_check
      _
    $region143: #{_lambda_.1} parent=1 // pred_check_branch
      %291 = sbr.rel (0) target = $region145
    $region144: #{_lambda_.1} parent=1 // pred_region
      %293 = dma.done [#allocation19], 768
    $region145: #{_lambda_.1} parent=1 // pred_fallthru
      _
    // Predicated region
    $region146: #{_lambda_.1} parent=1 // pred_check
      _
    $region147: #{_lambda_.1} parent=1 // pred_check_branch
      %295 = sbr.rel (0) target = $region149
    $region148: #{_lambda_.1} parent=1 // pred_region
      %297 = dma.done [#allocation22], 16
    $region149: #{_lambda_.1} parent=1 // pred_fallthru
      _
    // Predicated region
    $region150: #{_lambda_.1} parent=1 // pred_check
      _
    $region151: #{_lambda_.1} parent=1 // pred_check_branch
      %299 = sbr.rel (0) target = $region153
    $region152: #{_lambda_.1} parent=1 // pred_region
      %301 = dma.done [#allocation22], 16
    $region153: #{_lambda_.1} parent=1 // pred_fallthru
      _
    // Predicated region
    $region154: #{_lambda_.1} parent=1 // pred_check
      _
    $region155: #{_lambda_.1} parent=1 // pred_check_branch
      %303 = sbr.rel (0) target = $region157
    $region156: #{_lambda_.1} parent=1 // pred_region
      %305 = dma.done [#allocation25], 384
    $region157: #{_lambda_.1} parent=1 // pred_fallthru
      _
    // Predicated region
    $region158: #{_lambda_.1} parent=1 // pred_check
      _
    $region159: #{_lambda_.1} parent=1 // pred_check_branch
      %307 = sbr.rel (0) target = $region161
    $region160: #{_lambda_.1} parent=1 // pred_region
      %309 = dma.done [#allocation25], 384
    $region161: #{_lambda_.1} parent=1 // pred_fallthru
      _
    %310 = sfence
    %v311 = vld [vmem:[#allocation2] sm:$0xff]
    %v312 = vld [vmem:[#allocation5] sm:$0xff]
    %v313 = vld [vmem:[#allocation5 + $0x8] sm:$0x3]
    %vm314 = vcmask 80896
    %v316 = vsel %vm314, %v311, 0
    %vm318 = vcmask 1041408
    %v320 = vsel %vm318, %v313, 0
    %322 = vmatpush.msra.mxu0 0.0
    %323 = vmatpush.msra.mxu0 0.0
    %324 = vmatpush.msra.mxu0 0.0
    %325 = vmatpush.msra.mxu0 0.0
    %326 = vmatpush.msra.mxu0 0.0
    %327 = vmatpush.msra.mxu0 0.0
    %328 = vmatpush.msra.mxu0 0.0
    %329 = vmatpush.msra.mxu0 0.0
    %330 = vmatpush.msra.mxu0 0.0
    %331 = vmatpush.msra.mxu0 0.0
    %332 = vmatpush.msra.mxu0 0.0
    %333 = vmatpush.msra.mxu0 0.0
    %334 = vmatpush.msra.mxu0 0.0
    %335 = vmatpush.msra.mxu0 0.0
    %336 = vmatpush.msra.mxu0 %v320
    %337 = vmatpush.msra.mxu0 %v312
    %338 = vmatmul.f32.gmra.mxu0 %v316
    %v339 = vpop.f32.mrf.mxu0
    %v340 = vadd.f32 0.0, %v339
    %341 = vdwg.mxu0
    %v342 = vmax.f32 %v340, 0.0
    %vm343 = vcmask 64512
    %v344 = vsel %vm343, %v342, -inf
    %345 = vmax.xlane.f32.xlu0 %v344
    %v346 = vpop.xlane.xlu0 %345
    %v347 = vsub.f32 %v342, %v346
    %v348 = vmul.f32 %v347, 1.442695
    %v349 = vpow.pop %v348
    %v350 = vsel %vm343, %v349, 0.0
    %351 = vadd.xlane.f32.xlu0 %v350
    %v352 = vpop.xlane.xlu0 %351
    %v353 = vrcp.pop %v352
    %v354 = vmul.f32 %v352, %v353
    %v355 = vsub.f32 1.0, %v354
    %v356 = vmul.f32 %v353, %v355
    %v357 = vadd.f32 %v353, %v356
    %vm358 = vweird.f32 %v352
    %vm359 = vweird.f32 %v353
    %vm360 = vmor %vm358, %vm359
    %v361 = vsel %vm360, %v353, %v357
    %v362 = vand.u32 2147483647, %v352
    %vm363 = vcmp.eq.f32.partialorder %v362, 8.507059e+37
    %v364 = vand.u32 %v352, 2147483648
    %v365 = vor.u32 1.1754944e-38, %v364
    %v366 = vsel %vm363, %v365, %v361
    %v367 = vmul.f32 %v349, %v366
    %v368 = vld [vmem:[%s0] sm:$0xff]
    %s369 = scalar_lea.vmem %s0, 8
    %v370 = vld [vmem:[%s369] sm:$0xff]
    %372 = vrot.lane.b32.xlu0 %v370, 13
    %v373 = vpop.permute.xlu0 %372
    %vm375 = vcmask 105472
    %v376 = vsel %vm375, %v368, %v373
    %378 = vrot.lane.b32.xlu0 %v376, 127
    %v379 = vpop.permute.xlu0 %378
    %vm381 = vcmask 97280
    %v382 = vsel %vm381, %v376, %v379
    %383 = vrot.lane.b32.xlu0 %v376, 126
    %v384 = vpop.permute.xlu0 %383
    %v386 = vsel %vm381, %v379, %v384
    %v387 = vld [vmem:[#allocation7] sm:$0xff]
    %v388 = vld [vmem:[#allocation7 + $0x8] sm:$0xff]
    %v389 = vld [vmem:[#allocation8] sm:$0xff]
    %v390 = vld [vmem:[#allocation8 + $0x8] sm:$0xff]
    %392 = vset.pattern.permute.xlu0 0
    %393 = vperm.xlu0 %392, %v389
    %v394 = vpop.permute.xlu0 %393
    %397 = vset.pattern.permute.xlu0 0
    %398 = vperm.xlu0 %397, %v390
    %v399 = vpop.permute.xlu0 %398
    %vm401 = vcmask 130048
    %v403 = vsel %vm401, %v387, 0
    %v406 = vsel %vm401, %v388, 0
    %408 = vmatpush.msra.mxu0 0.0
    %409 = vmatpush.msra.mxu0 0.0
    %410 = vmatpush.msra.mxu0 0.0
    %411 = vmatpush.msra.mxu0 0.0
    %412 = vmatpush.msra.mxu0 0.0
    %413 = vmatpush.msra.mxu0 0.0
    %414 = vmatpush.msra.mxu0 0.0
    %415 = vmatpush.msra.mxu0 0.0
    %416 = vmatpush.msra.mxu0 0.0
    %417 = vmatpush.msra.mxu0 0.0
    %418 = vmatpush.msra.mxu0 0.0
    %419 = vmatpush.msra.mxu0 0.0
    %420 = vmatpush.msra.mxu0 0.0
    %421 = vmatpush.msra.mxu0 0.0
    %422 = vmatpush.msra.mxu0 %v386
    %423 = vmatpush.msra.mxu0 %v382
    %424 = vmatmul.f32.gmra.mxu0 %v403
    %v425 = vpop.f32.mrf.mxu0
    %v426 = vadd.f32 %v394, %v425
    %427 = vmatmul.f32.gmra.mxu0 %v406
    %v428 = vpop.f32.mrf.mxu0
    %v429 = vadd.f32 %v399, %v428
    %430 = vdwg.mxu0
    %v431 = vtanh.pop %v426
    %v432 = vxor.u32 %v429, 2147483648
    %v433 = vmul.f32 %v432, 1.442695
    %v434 = vpow.pop %v433
    %v435 = vadd.f32 %v434, 1.0
    %v436 = vrcp.pop %v435
    %v437 = vmul.f32 %v435, %v436
    %v438 = vsub.f32 1.0, %v437
    %v439 = vmul.f32 %v436, %v438
    %v440 = vadd.f32 %v436, %v439
    %vm441 = vweird.f32 %v435
    %vm442 = vweird.f32 %v436
    %vm443 = vmor %vm441, %vm442
    %v444 = vsel %vm443, %v436, %v440
    %v445 = vand.u32 2147483647, %v435
    %vm446 = vcmp.eq.f32.partialorder %v445, 8.507059e+37
    %v447 = vand.u32 %v435, 2147483648
    %v448 = vor.u32 1.1754944e-38, %v447
    %v449 = vsel %vm446, %v448, %v444
    %v450 = vmul.f32 1.0, %v449
    %v451 = vmul.f32 %v431, %v450
    %v453 = vsel %vm343, %v367, 0
    %455 = vmatpush.msra.mxu0 0.0
    %456 = vmatpush.msra.mxu0 0.0
    %457 = vmatpush.msra.mxu0 0.0
    %458 = vmatpush.msra.mxu0 0.0
    %459 = vmatpush.msra.mxu0 0.0
    %460 = vmatpush.msra.mxu0 0.0
    %461 = vmatpush.msra.mxu0 0.0
    %462 = vmatpush.msra.mxu0 0.0
    %463 = vmatpush.msra.mxu0 0.0
    %464 = vmatpush.msra.mxu0 0.0
    %465 = vmatpush.msra.mxu0 0.0
    %466 = vmatpush.msra.mxu0 0.0
    %467 = vmatpush.msra.mxu0 0.0
    %468 = vmatpush.msra.mxu0 0.0
    %469 = vmatpush.msra.mxu0 0.0
    %470 = vmatpush.msra.mxu0 %v451
    %471 = vmatmul.f32.gmra.mxu0 %v453
    %v472 = vpop.f32.mrf.mxu0
    %v473 = vadd.f32 0.0, %v472
    %474 = vdwg.mxu0
    %475 = vmatpush.msra.mxu0 0.0
    %476 = vmatpush.msra.mxu0 0.0
    %477 = vmatpush.msra.mxu0 0.0
    %478 = vmatpush.msra.mxu0 0.0
    %479 = vmatpush.msra.mxu0 0.0
    %480 = vmatpush.msra.mxu0 0.0
    %481 = vmatpush.msra.mxu0 0.0
    %482 = vmatpush.msra.mxu0 0.0
    %483 = vmatpush.msra.mxu0 0.0
    %484 = vmatpush.msra.mxu0 0.0
    %485 = vmatpush.msra.mxu0 0.0
    %486 = vmatpush.msra.mxu0 0.0
    %487 = vmatpush.msra.mxu0 0.0
    %488 = vmatpush.msra.mxu0 0.0
    %489 = vmatpush.msra.mxu0 0.0
    %490 = vmatpush.msra.mxu0 %v473
    %491 = vmatmul.f32.gmra.mxu0 %v453
    %v492 = vpop.f32.mrf.mxu0
    %v493 = vadd.f32 0.0, %v492
    %494 = vdwg.mxu0
    %496 = vrot.lane.b32.xlu0 %v473, 24
    %v497 = vpop.permute.xlu0 %496
    %500 = vrot.lane.b32.xlu0 %v493, 48
    %v501 = vpop.permute.xlu0 %500
    %vm503 = vcmask 195584
    %v504 = vsel %vm503, %v451, %v497
    %vm505 = vcmask 392192
    %v506 = vsel %vm505, %v504, %v501
    %v507 = vld [vmem:[#allocation11] sm:$0xff]
    %v508 = vld [vmem:[#allocation11 + $0x8] sm:$0xff]
    %v509 = vld [vmem:[#allocation11 + $0x10] sm:$0xff]
    %v510 = vld [vmem:[#allocation11 + $0x18] sm:$0xff]
    %v511 = vld [vmem:[#allocation11 + $0x20] sm:$0xff]
    %v512 = vld [vmem:[#allocation11 + $0x28] sm:$0xff]
    %v513 = vld [vmem:[#allocation11 + $0x30] sm:$0xff]
    %v514 = vld [vmem:[#allocation11 + $0x38] sm:$0xff]
    %v515 = vld [vmem:[#allocation11 + $0x40] sm:$0xff]
    %v516 = vld [vmem:[#allocation12] sm:$0x1]
    %v518 = vperm.slane %v516, 0
    %vm520 = vcmask 588800
    %v522 = vsel %vm520, %v506, 0
    %524 = vmatpush.msra.mxu0 0.0
    %525 = vmatpush.msra.mxu0 0.0
    %526 = vmatpush.msra.mxu0 0.0
    %527 = vmatpush.msra.mxu0 0.0
    %528 = vmatpush.msra.mxu0 0.0
    %529 = vmatpush.msra.mxu0 0.0
    %530 = vmatpush.msra.mxu0 0.0
    %531 = vmatpush.msra.mxu0 %v515
    %532 = vmatpush.msra.mxu0 %v514
    %533 = vmatpush.msra.mxu0 %v513
    %534 = vmatpush.msra.mxu0 %v512
    %535 = vmatpush.msra.mxu0 %v511
    %536 = vmatpush.msra.mxu0 %v510
    %537 = vmatpush.msra.mxu0 %v509
    %538 = vmatpush.msra.mxu0 %v508
    %539 = vmatpush.msra.mxu0 %v507
    %540 = vmatmul.f32.gmra.mxu0 %v522
    %v541 = vpop.f32.mrf.mxu0
    %v542 = vadd.f32 %v518, %v541
    %543 = vdwg.mxu0
    %v544 = vadd.f32 %v542, %v386
    %s545 = sld [smem:[#allocation10]]
    %v546 = vstv %s545
    %v547 = vmul.f32 %v544, %v546
    %s548 = sld [smem:[#allocation10 + $0x1]]
    %v549 = vstv %s548
    %v550 = vadd.f32 %v547, %v549
    %552 = vrot.lane.b32.xlu0 %v550, 126
    %v553 = vpop.permute.xlu0 %552
    %v555 = vsel %vm314, %v550, %v553
    %556 = vrot.lane.b32.xlu0 %v550, 124
    %v557 = vpop.permute.xlu0 %556
    %v559 = vsel %vm314, %v553, %v557
    %s560 = scalar_lea.vmem [#allocation7], 16
    %v561 = vld [vmem:[%s560] sm:$0xff]
    %v562 = vld [vmem:[%s560 + $0x8] sm:$0xff]
    %s563 = scalar_lea.vmem [#allocation8], 16
    %v564 = vld [vmem:[%s563] sm:$0xff]
    %v565 = vld [vmem:[%s563 + $0x8] sm:$0xff]
    %567 = vset.pattern.permute.xlu0 0
    %568 = vperm.xlu0 %567, %v564
    %v569 = vpop.permute.xlu0 %568
    %572 = vset.pattern.permute.xlu0 0
    %573 = vperm.xlu0 %572, %v565
    %v574 = vpop.permute.xlu0 %573
    %v577 = vsel %vm401, %v561, 0
    %v580 = vsel %vm401, %v562, 0
    %582 = vmatpush.msra.mxu0 0.0
    %583 = vmatpush.msra.mxu0 0.0
    %584 = vmatpush.msra.mxu0 0.0
    %585 = vmatpush.msra.mxu0 0.0
    %586 = vmatpush.msra.mxu0 0.0
    %587 = vmatpush.msra.mxu0 0.0
    %588 = vmatpush.msra.mxu0 0.0
    %589 = vmatpush.msra.mxu0 0.0
    %590 = vmatpush.msra.mxu0 0.0
    %591 = vmatpush.msra.mxu0 0.0
    %592 = vmatpush.msra.mxu0 0.0
    %593 = vmatpush.msra.mxu0 0.0
    %594 = vmatpush.msra.mxu0 0.0
    %595 = vmatpush.msra.mxu0 0.0
    %596 = vmatpush.msra.mxu0 %v559
    %597 = vmatpush.msra.mxu0 %v555
    %598 = vmatmul.f32.gmra.mxu0 %v577
    %v599 = vpop.f32.mrf.mxu0
    %v600 = vadd.f32 %v569, %v599
    %601 = vmatmul.f32.gmra.mxu0 %v580
    %v602 = vpop.f32.mrf.mxu0
    %v603 = vadd.f32 %v574, %v602
    %604 = vdwg.mxu0
    %v605 = vtanh.pop %v600
    %v606 = vxor.u32 %v603, 2147483648
    %v607 = vmul.f32 %v606, 1.442695
    %v608 = vpow.pop %v607
    %v609 = vadd.f32 %v608, 1.0
    %v610 = vrcp.pop %v609
    %v611 = vmul.f32 %v609, %v610
    %v612 = vsub.f32 1.0, %v611
    %v613 = vmul.f32 %v610, %v612
    %v614 = vadd.f32 %v610, %v613
    %vm615 = vweird.f32 %v609
    %vm616 = vweird.f32 %v610
    %vm617 = vmor %vm615, %vm616
    %v618 = vsel %vm617, %v610, %v614
    %v619 = vand.u32 2147483647, %v609
    %vm620 = vcmp.eq.f32.partialorder %v619, 8.507059e+37
    %v621 = vand.u32 %v609, 2147483648
    %v622 = vor.u32 1.1754944e-38, %v621
    %v623 = vsel %vm620, %v622, %v618
    %v624 = vmul.f32 1.0, %v623
    %v625 = vmul.f32 %v605, %v624
    %627 = vrot.lane.b32.xlu0 %v451, 126
    %v628 = vpop.permute.xlu0 %627
    %630 = vrot.lane.b32.xlu0 %v451, 124
    %v631 = vpop.permute.xlu0 %630
    %v633 = vsel %vm314, %v628, %v631
    %v634 = vadd.f32 %v625, %v633
    %635 = vmatpush.msra.mxu0 0.0
    %636 = vmatpush.msra.mxu0 0.0
    %637 = vmatpush.msra.mxu0 0.0
    %638 = vmatpush.msra.mxu0 0.0
    %639 = vmatpush.msra.mxu0 0.0
    %640 = vmatpush.msra.mxu0 0.0
    %641 = vmatpush.msra.mxu0 0.0
    %642 = vmatpush.msra.mxu0 0.0
    %643 = vmatpush.msra.mxu0 0.0
    %644 = vmatpush.msra.mxu0 0.0
    %645 = vmatpush.msra.mxu0 0.0
    %646 = vmatpush.msra.mxu0 0.0
    %647 = vmatpush.msra.mxu0 0.0
    %648 = vmatpush.msra.mxu0 0.0
    %649 = vmatpush.msra.mxu0 0.0
    %650 = vmatpush.msra.mxu0 %v625
    %651 = vmatmul.f32.gmra.mxu0 %v453
    %v652 = vpop.f32.mrf.mxu0
    %v653 = vadd.f32 0.0, %v652
    %654 = vdwg.mxu0
    %655 = vmatpush.msra.mxu0 0.0
    %656 = vmatpush.msra.mxu0 0.0
    %657 = vmatpush.msra.mxu0 0.0
    %658 = vmatpush.msra.mxu0 0.0
    %659 = vmatpush.msra.mxu0 0.0
    %660 = vmatpush.msra.mxu0 0.0
    %661 = vmatpush.msra.mxu0 0.0
    %662 = vmatpush.msra.mxu0 0.0
    %663 = vmatpush.msra.mxu0 0.0
    %664 = vmatpush.msra.mxu0 0.0
    %665 = vmatpush.msra.mxu0 0.0
    %666 = vmatpush.msra.mxu0 0.0
    %667 = vmatpush.msra.mxu0 0.0
    %668 = vmatpush.msra.mxu0 0.0
    %669 = vmatpush.msra.mxu0 0.0
    %670 = vmatpush.msra.mxu0 %v653
    %671 = vmatmul.f32.gmra.mxu0 %v453
    %v672 = vpop.f32.mrf.mxu0
    %v673 = vadd.f32 0.0, %v672
    %674 = vdwg.mxu0
    %676 = vrot.lane.b32.xlu0 %v653, 20
    %v677 = vpop.permute.xlu0 %676
    %680 = vrot.lane.b32.xlu0 %v673, 40
    %v681 = vpop.permute.xlu0 %680
    %vm683 = vcmask 162816
    %v684 = vsel %vm683, %v625, %v677
    %vm685 = vcmask 326656
    %v686 = vsel %vm685, %v684, %v681
    %v687 = vld [vmem:[#allocation14] sm:$0xff]
    %v688 = vld [vmem:[#allocation14 + $0x8] sm:$0xff]
    %v689 = vld [vmem:[#allocation14 + $0x10] sm:$0xff]
    %v690 = vld [vmem:[#allocation14 + $0x18] sm:$0xff]
    %v691 = vld [vmem:[#allocation14 + $0x20] sm:$0xff]
    %v692 = vld [vmem:[#allocation14 + $0x28] sm:$0xff]
    %v693 = vld [vmem:[#allocation14 + $0x30] sm:$0xff]
    %v694 = vld [vmem:[#allocation14 + $0x38] sm:$0xf]
    %v695 = vld [vmem:[#allocation15] sm:$0x1]
    %v697 = vperm.slane %v695, 0
    %vm699 = vcmask 490496
    %v701 = vsel %vm699, %v686, 0
    %vm703 = vcmask 1043456
    %v705 = vsel %vm703, %v694, 0
    %707 = vmatpush.msra.mxu0 0.0
    %708 = vmatpush.msra.mxu0 0.0
    %709 = vmatpush.msra.mxu0 0.0
    %710 = vmatpush.msra.mxu0 0.0
    %711 = vmatpush.msra.mxu0 0.0
    %712 = vmatpush.msra.mxu0 0.0
    %713 = vmatpush.msra.mxu0 0.0
    %714 = vmatpush.msra.mxu0 0.0
    %715 = vmatpush.msra.mxu0 %v705
    %716 = vmatpush.msra.mxu0 %v693
    %717 = vmatpush.msra.mxu0 %v692
    %718 = vmatpush.msra.mxu0 %v691
    %719 = vmatpush.msra.mxu0 %v690
    %720 = vmatpush.msra.mxu0 %v689
    %721 = vmatpush.msra.mxu0 %v688
    %722 = vmatpush.msra.mxu0 %v687
    %723 = vmatmul.f32.gmra.mxu0 %v701
    %v724 = vpop.f32.mrf.mxu0
    %v725 = vadd.f32 %v697, %v724
    %726 = vdwg.mxu0
    %v727 = vadd.f32 %v725, %v559
    %s728 = sld [smem:[#allocation10 + $0x80]]
    %v729 = vstv %s728
    %v730 = vmul.f32 %v727, %v729
    %s731 = sld [smem:[#allocation10 + $0x81]]
    %v732 = vstv %s731
    %v733 = vadd.f32 %v730, %v732
    %735 = vrot.lane.b32.xlu0 %v733, 127
    %v736 = vpop.permute.xlu0 %735
    %vm738 = vcmask 72704
    %v739 = vsel %vm738, %v733, %v736
    %740 = vrot.lane.b32.xlu0 %v733, 126
    %v741 = vpop.permute.xlu0 %740
    %v743 = vsel %vm738, %v736, %v741
    %s744 = scalar_lea.vmem [#allocation7], 32
    %v745 = vld [vmem:[%s744] sm:$0xff]
    %v746 = vld [vmem:[%s744 + $0x8] sm:$0xff]
    %s747 = scalar_lea.vmem [#allocation8], 32
    %v748 = vld [vmem:[%s747] sm:$0xff]
    %v749 = vld [vmem:[%s747 + $0x8] sm:$0xff]
    %751 = vset.pattern.permute.xlu0 0
    %752 = vperm.xlu0 %751, %v748
    %v753 = vpop.permute.xlu0 %752
    %756 = vset.pattern.permute.xlu0 0
    %757 = vperm.xlu0 %756, %v749
    %v758 = vpop.permute.xlu0 %757
    %v761 = vsel %vm401, %v745, 0
    %v764 = vsel %vm401, %v746, 0
    %766 = vmatpush.msra.mxu0 0.0
    %767 = vmatpush.msra.mxu0 0.0
    %768 = vmatpush.msra.mxu0 0.0
    %769 = vmatpush.msra.mxu0 0.0
    %770 = vmatpush.msra.mxu0 0.0
    %771 = vmatpush.msra.mxu0 0.0
    %772 = vmatpush.msra.mxu0 0.0
    %773 = vmatpush.msra.mxu0 0.0
    %774 = vmatpush.msra.mxu0 0.0
    %775 = vmatpush.msra.mxu0 0.0
    %776 = vmatpush.msra.mxu0 0.0
    %777 = vmatpush.msra.mxu0 0.0
    %778 = vmatpush.msra.mxu0 0.0
    %779 = vmatpush.msra.mxu0 0.0
    %780 = vmatpush.msra.mxu0 %v743
    %781 = vmatpush.msra.mxu0 %v739
    %782 = vmatmul.f32.gmra.mxu0 %v761
    %v783 = vpop.f32.mrf.mxu0
    %v784 = vadd.f32 %v753, %v783
    %785 = vmatmul.f32.gmra.mxu0 %v764
    %v786 = vpop.f32.mrf.mxu0
    %v787 = vadd.f32 %v758, %v786
    %788 = vdwg.mxu0
    %v789 = vtanh.pop %v784
    %v790 = vxor.u32 %v787, 2147483648
    %v791 = vmul.f32 %v790, 1.442695
    %v792 = vpow.pop %v791
    %v793 = vadd.f32 %v792, 1.0
    %v794 = vrcp.pop %v793
    %v795 = vmul.f32 %v793, %v794
    %v796 = vsub.f32 1.0, %v795
    %v797 = vmul.f32 %v794, %v796
    %v798 = vadd.f32 %v794, %v797
    %vm799 = vweird.f32 %v793
    %vm800 = vweird.f32 %v794
    %vm801 = vmor %vm799, %vm800
    %v802 = vsel %vm801, %v794, %v798
    %v803 = vand.u32 2147483647, %v793
    %vm804 = vcmp.eq.f32.partialorder %v803, 8.507059e+37
    %v805 = vand.u32 %v793, 2147483648
    %v806 = vor.u32 1.1754944e-38, %v805
    %v807 = vsel %vm804, %v806, %v802
    %v808 = vmul.f32 1.0, %v807
    %v809 = vmul.f32 %v789, %v808
    %811 = vrot.lane.b32.xlu0 %v634, 127
    %v812 = vpop.permute.xlu0 %811
    %814 = vrot.lane.b32.xlu0 %v634, 126
    %v815 = vpop.permute.xlu0 %814
    %v817 = vsel %vm738, %v812, %v815
    %v818 = vadd.f32 %v809, %v817
    %819 = vmatpush.msra.mxu0 0.0
    %820 = vmatpush.msra.mxu0 0.0
    %821 = vmatpush.msra.mxu0 0.0
    %822 = vmatpush.msra.mxu0 0.0
    %823 = vmatpush.msra.mxu0 0.0
    %824 = vmatpush.msra.mxu0 0.0
    %825 = vmatpush.msra.mxu0 0.0
    %826 = vmatpush.msra.mxu0 0.0
    %827 = vmatpush.msra.mxu0 0.0
    %828 = vmatpush.msra.mxu0 0.0
    %829 = vmatpush.msra.mxu0 0.0
    %830 = vmatpush.msra.mxu0 0.0
    %831 = vmatpush.msra.mxu0 0.0
    %832 = vmatpush.msra.mxu0 0.0
    %833 = vmatpush.msra.mxu0 0.0
    %834 = vmatpush.msra.mxu0 %v809
    %835 = vmatmul.f32.gmra.mxu0 %v453
    %v836 = vpop.f32.mrf.mxu0
    %v837 = vadd.f32 0.0, %v836
    %838 = vdwg.mxu0
    %839 = vmatpush.msra.mxu0 0.0
    %840 = vmatpush.msra.mxu0 0.0
    %841 = vmatpush.msra.mxu0 0.0
    %842 = vmatpush.msra.mxu0 0.0
    %843 = vmatpush.msra.mxu0 0.0
    %844 = vmatpush.msra.mxu0 0.0
    %845 = vmatpush.msra.mxu0 0.0
    %846 = vmatpush.msra.mxu0 0.0
    %847 = vmatpush.msra.mxu0 0.0
    %848 = vmatpush.msra.mxu0 0.0
    %849 = vmatpush.msra.mxu0 0.0
    %850 = vmatpush.msra.mxu0 0.0
    %851 = vmatpush.msra.mxu0 0.0
    %852 = vmatpush.msra.mxu0 0.0
    %853 = vmatpush.msra.mxu0 0.0
    %854 = vmatpush.msra.mxu0 %v837
    %855 = vmatmul.f32.gmra.mxu0 %v453
    %v856 = vpop.f32.mrf.mxu0
    %v857 = vadd.f32 0.0, %v856
    %858 = vdwg.mxu0
    %860 = vrot.lane.b32.xlu0 %v837, 18
    %v861 = vpop.permute.xlu0 %860
    %864 = vrot.lane.b32.xlu0 %v857, 36
    %v865 = vpop.permute.xlu0 %864
    %vm867 = vcmask 146432
    %v868 = vsel %vm867, %v809, %v861
    %vm869 = vcmask 293888
    %v870 = vsel %vm869, %v868, %v865
    %v871 = vld [vmem:[#allocation17] sm:$0xff]
    %v872 = vld [vmem:[#allocation17 + $0x8] sm:$0xff]
    %v873 = vld [vmem:[#allocation17 + $0x10] sm:$0xff]
    %v874 = vld [vmem:[#allocation17 + $0x18] sm:$0xff]
    %v875 = vld [vmem:[#allocation17 + $0x20] sm:$0xff]
    %v876 = vld [vmem:[#allocation17 + $0x28] sm:$0xff]
    %v877 = vld [vmem:[#allocation17 + $0x30] sm:$0x3f]
    %v878 = vld [vmem:[#allocation18] sm:$0x1]
    %v880 = vperm.slane %v878, 0
    %vm882 = vcmask 441344
    %v884 = vsel %vm882, %v870, 0
    %vm886 = vcmask 1045504
    %v888 = vsel %vm886, %v877, 0
    %890 = vmatpush.msra.mxu0 0.0
    %891 = vmatpush.msra.mxu0 0.0
    %892 = vmatpush.msra.mxu0 0.0
    %893 = vmatpush.msra.mxu0 0.0
    %894 = vmatpush.msra.mxu0 0.0
    %895 = vmatpush.msra.mxu0 0.0
    %896 = vmatpush.msra.mxu0 0.0
    %897 = vmatpush.msra.mxu0 0.0
    %898 = vmatpush.msra.mxu0 0.0
    %899 = vmatpush.msra.mxu0 %v888
    %900 = vmatpush.msra.mxu0 %v876
    %901 = vmatpush.msra.mxu0 %v875
    %902 = vmatpush.msra.mxu0 %v874
    %903 = vmatpush.msra.mxu0 %v873
    %904 = vmatpush.msra.mxu0 %v872
    %905 = vmatpush.msra.mxu0 %v871
    %906 = vmatmul.f32.gmra.mxu0 %v884
    %v907 = vpop.f32.mrf.mxu0
    %v908 = vadd.f32 %v880, %v907
    %909 = vdwg.mxu0
    %v910 = vadd.f32 %v908, %v743
    %s911 = sld [smem:[#allocation10 + $0x100]]
    %v912 = vstv %s911
    %v913 = vmul.f32 %v910, %v912
    %s914 = sld [smem:[#allocation10 + $0x101]]
    %v915 = vstv %s914
    %v916 = vadd.f32 %v913, %v915
    %918 = vrot.lane.b32.xlu0 %v916, 126
    %v919 = vpop.permute.xlu0 %918
    %vm921 = vcmask 56320
    %v922 = vsel %vm921, %v916, %v919
    %923 = vrot.lane.b32.xlu0 %v916, 124
    %v924 = vpop.permute.xlu0 %923
    %v926 = vsel %vm921, %v919, %v924
    %s927 = scalar_lea.vmem [#allocation7], 48
    %v928 = vld [vmem:[%s927] sm:$0xff]
    %v929 = vld [vmem:[%s927 + $0x8] sm:$0xff]
    %s930 = scalar_lea.vmem [#allocation8], 48
    %v931 = vld [vmem:[%s930] sm:$0xff]
    %v932 = vld [vmem:[%s930 + $0x8] sm:$0xff]
    %934 = vset.pattern.permute.xlu0 0
    %935 = vperm.xlu0 %934, %v931
    %v936 = vpop.permute.xlu0 %935
    %939 = vset.pattern.permute.xlu0 0
    %940 = vperm.xlu0 %939, %v932
    %v941 = vpop.permute.xlu0 %940
    %v944 = vsel %vm401, %v928, 0
    %v947 = vsel %vm401, %v929, 0
    %949 = vmatpush.msra.mxu0 0.0
    %950 = vmatpush.msra.mxu0 0.0
    %951 = vmatpush.msra.mxu0 0.0
    %952 = vmatpush.msra.mxu0 0.0
    %953 = vmatpush.msra.mxu0 0.0
    %954 = vmatpush.msra.mxu0 0.0
    %955 = vmatpush.msra.mxu0 0.0
    %956 = vmatpush.msra.mxu0 0.0
    %957 = vmatpush.msra.mxu0 0.0
    %958 = vmatpush.msra.mxu0 0.0
    %959 = vmatpush.msra.mxu0 0.0
    %960 = vmatpush.msra.mxu0 0.0
    %961 = vmatpush.msra.mxu0 0.0
    %962 = vmatpush.msra.mxu0 0.0
    %963 = vmatpush.msra.mxu0 %v926
    %964 = vmatpush.msra.mxu0 %v922
    %965 = vmatmul.f32.gmra.mxu0 %v944
    %v966 = vpop.f32.mrf.mxu0
    %v967 = vadd.f32 %v936, %v966
    %968 = vmatmul.f32.gmra.mxu0 %v947
    %v969 = vpop.f32.mrf.mxu0
    %v970 = vadd.f32 %v941, %v969
    %971 = vdwg.mxu0
    %v972 = vtanh.pop %v967
    %v973 = vxor.u32 %v970, 2147483648
    %v974 = vmul.f32 %v973, 1.442695
    %v975 = vpow.pop %v974
    %v976 = vadd.f32 %v975, 1.0
    %v977 = vrcp.pop %v976
    %v978 = vmul.f32 %v976, %v977
    %v979 = vsub.f32 1.0, %v978
    %v980 = vmul.f32 %v977, %v979
    %v981 = vadd.f32 %v977, %v980
    %vm982 = vweird.f32 %v976
    %vm983 = vweird.f32 %v977
    %vm984 = vmor %vm982, %vm983
    %v985 = vsel %vm984, %v977, %v981
    %v986 = vand.u32 2147483647, %v976
    %vm987 = vcmp.eq.f32.partialorder %v986, 8.507059e+37
    %v988 = vand.u32 %v976, 2147483648
    %v989 = vor.u32 1.1754944e-38, %v988
    %v990 = vsel %vm987, %v989, %v985
    %v991 = vmul.f32 1.0, %v990
    %v992 = vmul.f32 %v972, %v991
    %994 = vrot.lane.b32.xlu0 %v818, 126
    %v995 = vpop.permute.xlu0 %994
    %997 = vrot.lane.b32.xlu0 %v818, 124
    %v998 = vpop.permute.xlu0 %997
    %v1000 = vsel %vm921, %v995, %v998
    %v1001 = vadd.f32 %v992, %v1000
    %1002 = vmatpush.msra.mxu0 0.0
    %1003 = vmatpush.msra.mxu0 0.0
    %1004 = vmatpush.msra.mxu0 0.0
    %1005 = vmatpush.msra.mxu0 0.0
    %1006 = vmatpush.msra.mxu0 0.0
    %1007 = vmatpush.msra.mxu0 0.0
    %1008 = vmatpush.msra.mxu0 0.0
    %1009 = vmatpush.msra.mxu0 0.0
    %1010 = vmatpush.msra.mxu0 0.0
    %1011 = vmatpush.msra.mxu0 0.0
    %1012 = vmatpush.msra.mxu0 0.0
    %1013 = vmatpush.msra.mxu0 0.0
    %1014 = vmatpush.msra.mxu0 0.0
    %1015 = vmatpush.msra.mxu0 0.0
    %1016 = vmatpush.msra.mxu0 0.0
    %1017 = vmatpush.msra.mxu0 %v992
    %1018 = vmatmul.f32.gmra.mxu0 %v453
    %v1019 = vpop.f32.mrf.mxu0
    %v1020 = vadd.f32 0.0, %v1019
    %1021 = vdwg.mxu0
    %1022 = vmatpush.msra.mxu0 0.0
    %1023 = vmatpush.msra.mxu0 0.0
    %1024 = vmatpush.msra.mxu0 0.0
    %1025 = vmatpush.msra.mxu0 0.0
    %1026 = vmatpush.msra.mxu0 0.0
    %1027 = vmatpush.msra.mxu0 0.0
    %1028 = vmatpush.msra.mxu0 0.0
    %1029 = vmatpush.msra.mxu0 0.0
    %1030 = vmatpush.msra.mxu0 0.0
    %1031 = vmatpush.msra.mxu0 0.0
    %1032 = vmatpush.msra.mxu0 0.0
    %1033 = vmatpush.msra.mxu0 0.0
    %1034 = vmatpush.msra.mxu0 0.0
    %1035 = vmatpush.msra.mxu0 0.0
    %1036 = vmatpush.msra.mxu0 0.0
    %1037 = vmatpush.msra.mxu0 %v1020
    %1038 = vmatmul.f32.gmra.mxu0 %v453
    %v1039 = vpop.f32.mrf.mxu0
    %v1040 = vadd.f32 0.0, %v1039
    %1041 = vdwg.mxu0
    %1043 = vrot.lane.b32.xlu0 %v1020, 14
    %v1044 = vpop.permute.xlu0 %1043
    %1047 = vrot.lane.b32.xlu0 %v1040, 28
    %v1048 = vpop.permute.xlu0 %1047
    %vm1050 = vcmask 113664
    %v1051 = vsel %vm1050, %v992, %v1044
    %vm1052 = vcmask 228352
    %v1053 = vsel %vm1052, %v1051, %v1048
    %v1054 = vld [vmem:[#allocation20] sm:$0xff]
    %v1055 = vld [vmem:[#allocation20 + $0x8] sm:$0xff]
    %v1056 = vld [vmem:[#allocation20 + $0x10] sm:$0xff]
    %v1057 = vld [vmem:[#allocation20 + $0x18] sm:$0xff]
    %v1058 = vld [vmem:[#allocation20 + $0x20] sm:$0xff]
    %v1059 = vld [vmem:[#allocation20 + $0x28] sm:$0x3]
    %v1060 = vld [vmem:[#allocation21] sm:$0x1]
    %v1062 = vperm.slane %v1060, 0
    %vm1064 = vcmask 343040
    %v1066 = vsel %vm1064, %v1053, 0
    %v1069 = vsel %vm318, %v1059, 0
    %1071 = vmatpush.msra.mxu0 0.0
    %1072 = vmatpush.msra.mxu0 0.0
    %1073 = vmatpush.msra.mxu0 0.0
    %1074 = vmatpush.msra.mxu0 0.0
    %1075 = vmatpush.msra.mxu0 0.0
    %1076 = vmatpush.msra.mxu0 0.0
    %1077 = vmatpush.msra.mxu0 0.0
    %1078 = vmatpush.msra.mxu0 0.0
    %1079 = vmatpush.msra.mxu0 0.0
    %1080 = vmatpush.msra.mxu0 0.0
    %1081 = vmatpush.msra.mxu0 %v1069
    %1082 = vmatpush.msra.mxu0 %v1058
    %1083 = vmatpush.msra.mxu0 %v1057
    %1084 = vmatpush.msra.mxu0 %v1056
    %1085 = vmatpush.msra.mxu0 %v1055
    %1086 = vmatpush.msra.mxu0 %v1054
    %1087 = vmatmul.f32.gmra.mxu0 %v1066
    %v1088 = vpop.f32.mrf.mxu0
    %v1089 = vadd.f32 %v1062, %v1088
    %1090 = vdwg.mxu0
    %v1091 = vadd.f32 %v1089, %v926
    %s1092 = sld [smem:[#allocation10 + $0x180]]
    %v1093 = vstv %s1092
    %v1094 = vmul.f32 %v1091, %v1093
    %s1095 = sld [smem:[#allocation10 + $0x181]]
    %v1096 = vstv %s1095
    %v1097 = vadd.f32 %v1094, %v1096
    %1099 = vrot.lane.b32.xlu0 %v1097, 127
    %v1100 = vpop.permute.xlu0 %1099
    %vm1102 = vcmask 48128
    %v1103 = vsel %vm1102, %v1097, %v1100
    %1104 = vrot.lane.b32.xlu0 %v1097, 126
    %v1105 = vpop.permute.xlu0 %1104
    %v1107 = vsel %vm1102, %v1100, %v1105
    %s1108 = scalar_lea.vmem [#allocation7], 64
    %v1109 = vld [vmem:[%s1108] sm:$0xff]
    %v1110 = vld [vmem:[%s1108 + $0x8] sm:$0xff]
    %s1111 = scalar_lea.vmem [#allocation8], 64
    %v1112 = vld [vmem:[%s1111] sm:$0xff]
    %v1113 = vld [vmem:[%s1111 + $0x8] sm:$0xff]
    %1115 = vset.pattern.permute.xlu0 0
    %1116 = vperm.xlu0 %1115, %v1112
    %v1117 = vpop.permute.xlu0 %1116
    %1120 = vset.pattern.permute.xlu0 0
    %1121 = vperm.xlu0 %1120, %v1113
    %v1122 = vpop.permute.xlu0 %1121
    %v1125 = vsel %vm401, %v1109, 0
    %v1128 = vsel %vm401, %v1110, 0
    %1130 = vmatpush.msra.mxu0 0.0
    %1131 = vmatpush.msra.mxu0 0.0
    %1132 = vmatpush.msra.mxu0 0.0
    %1133 = vmatpush.msra.mxu0 0.0
    %1134 = vmatpush.msra.mxu0 0.0
    %1135 = vmatpush.msra.mxu0 0.0
    %1136 = vmatpush.msra.mxu0 0.0
    %1137 = vmatpush.msra.mxu0 0.0
    %1138 = vmatpush.msra.mxu0 0.0
    %1139 = vmatpush.msra.mxu0 0.0
    %1140 = vmatpush.msra.mxu0 0.0
    %1141 = vmatpush.msra.mxu0 0.0
    %1142 = vmatpush.msra.mxu0 0.0
    %1143 = vmatpush.msra.mxu0 0.0
    %1144 = vmatpush.msra.mxu0 %v1107
    %1145 = vmatpush.msra.mxu0 %v1103
    %1146 = vmatmul.f32.gmra.mxu0 %v1125
    %v1147 = vpop.f32.mrf.mxu0
    %v1148 = vadd.f32 %v1117, %v1147
    %1149 = vmatmul.f32.gmra.mxu0 %v1128
    %v1150 = vpop.f32.mrf.mxu0
    %v1151 = vadd.f32 %v1122, %v1150
    %1152 = vdwg.mxu0
    %v1153 = vtanh.pop %v1148
    %v1154 = vxor.u32 %v1151, 2147483648
    %v1155 = vmul.f32 %v1154, 1.442695
    %v1156 = vpow.pop %v1155
    %v1157 = vadd.f32 %v1156, 1.0
    %v1158 = vrcp.pop %v1157
    %v1159 = vmul.f32 %v1157, %v1158
    %v1160 = vsub.f32 1.0, %v1159
    %v1161 = vmul.f32 %v1158, %v1160
    %v1162 = vadd.f32 %v1158, %v1161
    %vm1163 = vweird.f32 %v1157
    %vm1164 = vweird.f32 %v1158
    %vm1165 = vmor %vm1163, %vm1164
    %v1166 = vsel %vm1165, %v1158, %v1162
    %v1167 = vand.u32 2147483647, %v1157
    %vm1168 = vcmp.eq.f32.partialorder %v1167, 8.507059e+37
    %v1169 = vand.u32 %v1157, 2147483648
    %v1170 = vor.u32 1.1754944e-38, %v1169
    %v1171 = vsel %vm1168, %v1170, %v1166
    %v1172 = vmul.f32 1.0, %v1171
    %v1173 = vmul.f32 %v1153, %v1172
    %1175 = vrot.lane.b32.xlu0 %v1001, 127
    %v1176 = vpop.permute.xlu0 %1175
    %1178 = vrot.lane.b32.xlu0 %v1001, 126
    %v1179 = vpop.permute.xlu0 %1178
    %v1181 = vsel %vm1102, %v1176, %v1179
    %v1182 = vadd.f32 %v1173, %v1181
    %1183 = vmatpush.msra.mxu0 0.0
    %1184 = vmatpush.msra.mxu0 0.0
    %1185 = vmatpush.msra.mxu0 0.0
    %1186 = vmatpush.msra.mxu0 0.0
    %1187 = vmatpush.msra.mxu0 0.0
    %1188 = vmatpush.msra.mxu0 0.0
    %1189 = vmatpush.msra.mxu0 0.0
    %1190 = vmatpush.msra.mxu0 0.0
    %1191 = vmatpush.msra.mxu0 0.0
    %1192 = vmatpush.msra.mxu0 0.0
    %1193 = vmatpush.msra.mxu0 0.0
    %1194 = vmatpush.msra.mxu0 0.0
    %1195 = vmatpush.msra.mxu0 0.0
    %1196 = vmatpush.msra.mxu0 0.0
    %1197 = vmatpush.msra.mxu0 0.0
    %1198 = vmatpush.msra.mxu0 %v1173
    %1199 = vmatmul.f32.gmra.mxu0 %v453
    %v1200 = vpop.f32.mrf.mxu0
    %v1201 = vadd.f32 0.0, %v1200
    %1202 = vdwg.mxu0
    %1203 = vmatpush.msra.mxu0 0.0
    %1204 = vmatpush.msra.mxu0 0.0
    %1205 = vmatpush.msra.mxu0 0.0
    %1206 = vmatpush.msra.mxu0 0.0
    %1207 = vmatpush.msra.mxu0 0.0
    %1208 = vmatpush.msra.mxu0 0.0
    %1209 = vmatpush.msra.mxu0 0.0
    %1210 = vmatpush.msra.mxu0 0.0
    %1211 = vmatpush.msra.mxu0 0.0
    %1212 = vmatpush.msra.mxu0 0.0
    %1213 = vmatpush.msra.mxu0 0.0
    %1214 = vmatpush.msra.mxu0 0.0
    %1215 = vmatpush.msra.mxu0 0.0
    %1216 = vmatpush.msra.mxu0 0.0
    %1217 = vmatpush.msra.mxu0 0.0
    %1218 = vmatpush.msra.mxu0 %v1201
    %1219 = vmatmul.f32.gmra.mxu0 %v453
    %v1220 = vpop.f32.mrf.mxu0
    %v1221 = vadd.f32 0.0, %v1220
    %1222 = vdwg.mxu0
    %1224 = vrot.lane.b32.xlu0 %v1201, 12
    %v1225 = vpop.permute.xlu0 %1224
    %1228 = vrot.lane.b32.xlu0 %v1221, 24
    %v1229 = vpop.permute.xlu0 %1228
    %v1231 = vsel %vm381, %v1173, %v1225
    %v1232 = vsel %vm503, %v1231, %v1229
    %v1233 = vld [vmem:[%s14] sm:$0xff]
    %v1234 = vld [vmem:[%s14 + $0x8] sm:$0xff]
    %v1235 = vld [vmem:[%s14 + $0x10] sm:$0xff]
    %v1236 = vld [vmem:[%s14 + $0x18] sm:$0xff]
    %v1237 = vld [vmem:[%s14 + $0x20] sm:$0xf]
    %v1238 = vld [vmem:[#allocation23] sm:$0x1]
    %v1240 = vperm.slane %v1238, 0
    %v1243 = vsel %vm869, %v1232, 0
    %v1246 = vsel %vm703, %v1237, 0
    %1248 = vmatpush.msra.mxu0 0.0
    %1249 = vmatpush.msra.mxu0 0.0
    %1250 = vmatpush.msra.mxu0 0.0
    %1251 = vmatpush.msra.mxu0 0.0
    %1252 = vmatpush.msra.mxu0 0.0
    %1253 = vmatpush.msra.mxu0 0.0
    %1254 = vmatpush.msra.mxu0 0.0
    %1255 = vmatpush.msra.mxu0 0.0
    %1256 = vmatpush.msra.mxu0 0.0
    %1257 = vmatpush.msra.mxu0 0.0
    %1258 = vmatpush.msra.mxu0 0.0
    %1259 = vmatpush.msra.mxu0 %v1246
    %1260 = vmatpush.msra.mxu0 %v1236
    %1261 = vmatpush.msra.mxu0 %v1235
    %1262 = vmatpush.msra.mxu0 %v1234
    %1263 = vmatpush.msra.mxu0 %v1233
    %1264 = vmatmul.f32.gmra.mxu0 %v1243
    %v1265 = vpop.f32.mrf.mxu0
    %v1266 = vadd.f32 %v1240, %v1265
    %1267 = vdwg.mxu0
    %v1268 = vadd.f32 %v1266, %v1107
    %s1269 = sld [smem:[#allocation10 + $0x200]]
    %v1270 = vstv %s1269
    %v1271 = vmul.f32 %v1268, %v1270
    %s1272 = sld [smem:[#allocation10 + $0x201]]
    %v1273 = vstv %s1272
    %v1274 = vadd.f32 %v1271, %v1273
    %1276 = vrot.lane.b32.xlu0 %v1274, 126
    %v1277 = vpop.permute.xlu0 %1276
    %vm1279 = vcmask 31744
    %v1280 = vsel %vm1279, %v1274, %v1277
    %1281 = vrot.lane.b32.xlu0 %v1274, 124
    %v1282 = vpop.permute.xlu0 %1281
    %v1284 = vsel %vm1279, %v1277, %v1282
    %s1285 = scalar_lea.vmem [#allocation7], 80
    %v1286 = vld [vmem:[%s1285] sm:$0xff]
    %v1287 = vld [vmem:[%s1285 + $0x8] sm:$0xff]
    %s1288 = scalar_lea.vmem [#allocation8], 80
    %v1289 = vld [vmem:[%s1288] sm:$0xff]
    %v1290 = vld [vmem:[%s1288 + $0x8] sm:$0xff]
    %1292 = vset.pattern.permute.xlu0 0
    %1293 = vperm.xlu0 %1292, %v1289
    %v1294 = vpop.permute.xlu0 %1293
    %1297 = vset.pattern.permute.xlu0 0
    %1298 = vperm.xlu0 %1297, %v1290
    %v1299 = vpop.permute.xlu0 %1298
    %v1302 = vsel %vm401, %v1286, 0
    %v1305 = vsel %vm401, %v1287, 0
    %1307 = vmatpush.msra.mxu0 0.0
    %1308 = vmatpush.msra.mxu0 0.0
    %1309 = vmatpush.msra.mxu0 0.0
    %1310 = vmatpush.msra.mxu0 0.0
    %1311 = vmatpush.msra.mxu0 0.0
    %1312 = vmatpush.msra.mxu0 0.0
    %1313 = vmatpush.msra.mxu0 0.0
    %1314 = vmatpush.msra.mxu0 0.0
    %1315 = vmatpush.msra.mxu0 0.0
    %1316 = vmatpush.msra.mxu0 0.0
    %1317 = vmatpush.msra.mxu0 0.0
    %1318 = vmatpush.msra.mxu0 0.0
    %1319 = vmatpush.msra.mxu0 0.0
    %1320 = vmatpush.msra.mxu0 0.0
    %1321 = vmatpush.msra.mxu0 %v1284
    %1322 = vmatpush.msra.mxu0 %v1280
    %1323 = vmatmul.f32.gmra.mxu0 %v1302
    %v1324 = vpop.f32.mrf.mxu0
    %v1325 = vadd.f32 %v1294, %v1324
    %1326 = vmatmul.f32.gmra.mxu0 %v1305
    %v1327 = vpop.f32.mrf.mxu0
    %v1328 = vadd.f32 %v1299, %v1327
    %1329 = vdwg.mxu0
    %v1330 = vtanh.pop %v1325
    %v1331 = vxor.u32 %v1328, 2147483648
    %v1332 = vmul.f32 %v1331, 1.442695
    %v1333 = vpow.pop %v1332
    %v1334 = vadd.f32 %v1333, 1.0
    %v1335 = vrcp.pop %v1334
    %v1336 = vmul.f32 %v1334, %v1335
    %v1337 = vsub.f32 1.0, %v1336
    %v1338 = vmul.f32 %v1335, %v1337
    %v1339 = vadd.f32 %v1335, %v1338
    %vm1340 = vweird.f32 %v1334
    %vm1341 = vweird.f32 %v1335
    %vm1342 = vmor %vm1340, %vm1341
    %v1343 = vsel %vm1342, %v1335, %v1339
    %v1344 = vand.u32 2147483647, %v1334
    %vm1345 = vcmp.eq.f32.partialorder %v1344, 8.507059e+37
    %v1346 = vand.u32 %v1334, 2147483648
    %v1347 = vor.u32 1.1754944e-38, %v1346
    %v1348 = vsel %vm1345, %v1347, %v1343
    %v1349 = vmul.f32 1.0, %v1348
    %v1350 = vmul.f32 %v1330, %v1349
    %1352 = vrot.lane.b32.xlu0 %v1182, 126
    %v1353 = vpop.permute.xlu0 %1352
    %1355 = vrot.lane.b32.xlu0 %v1182, 124
    %v1356 = vpop.permute.xlu0 %1355
    %v1358 = vsel %vm1279, %v1353, %v1356
    %v1359 = vadd.f32 %v1350, %v1358
    %1360 = vmatpush.msra.mxu0 0.0
    %1361 = vmatpush.msra.mxu0 0.0
    %1362 = vmatpush.msra.mxu0 0.0
    %1363 = vmatpush.msra.mxu0 0.0
    %1364 = vmatpush.msra.mxu0 0.0
    %1365 = vmatpush.msra.mxu0 0.0
    %1366 = vmatpush.msra.mxu0 0.0
    %1367 = vmatpush.msra.mxu0 0.0
    %1368 = vmatpush.msra.mxu0 0.0
    %1369 = vmatpush.msra.mxu0 0.0
    %1370 = vmatpush.msra.mxu0 0.0
    %1371 = vmatpush.msra.mxu0 0.0
    %1372 = vmatpush.msra.mxu0 0.0
    %1373 = vmatpush.msra.mxu0 0.0
    %1374 = vmatpush.msra.mxu0 0.0
    %1375 = vmatpush.msra.mxu0 %v1350
    %1376 = vmatmul.f32.gmra.mxu0 %v453
    %v1377 = vpop.f32.mrf.mxu0
    %v1378 = vadd.f32 0.0, %v1377
    %1379 = vdwg.mxu0
    %1380 = vmatpush.msra.mxu0 0.0
    %1381 = vmatpush.msra.mxu0 0.0
    %1382 = vmatpush.msra.mxu0 0.0
    %1383 = vmatpush.msra.mxu0 0.0
    %1384 = vmatpush.msra.mxu0 0.0
    %1385 = vmatpush.msra.mxu0 0.0
    %1386 = vmatpush.msra.mxu0 0.0
    %1387 = vmatpush.msra.mxu0 0.0
    %1388 = vmatpush.msra.mxu0 0.0
    %1389 = vmatpush.msra.mxu0 0.0
    %1390 = vmatpush.msra.mxu0 0.0
    %1391 = vmatpush.msra.mxu0 0.0
    %1392 = vmatpush.msra.mxu0 0.0
    %1393 = vmatpush.msra.mxu0 0.0
    %1394 = vmatpush.msra.mxu0 0.0
    %1395 = vmatpush.msra.mxu0 %v1378
    %1396 = vmatmul.f32.gmra.mxu0 %v453
    %v1397 = vpop.f32.mrf.mxu0
    %v1398 = vadd.f32 0.0, %v1397
    %1399 = vdwg.mxu0
    %1401 = vrot.lane.b32.xlu0 %v1378, 8
    %v1402 = vpop.permute.xlu0 %1401
    %1405 = vrot.lane.b32.xlu0 %v1398, 16
    %v1406 = vpop.permute.xlu0 %1405
    %v1408 = vsel %vm343, %v1350, %v1402
    %v1409 = vsel %vm401, %v1408, %v1406
    %v1410 = vld [vmem:[#allocation24] sm:$0xff]
    %v1411 = vld [vmem:[#allocation24 + $0x8] sm:$0xff]
    %v1412 = vld [vmem:[#allocation24 + $0x10] sm:$0xff]
    %v1413 = vld [vmem:[%s17] sm:$0x1]
    %v1415 = vperm.slane %v1413, 0
    %v1418 = vsel %vm503, %v1409, 0
    %1420 = vmatpush.msra.mxu0 0.0
    %1421 = vmatpush.msra.mxu0 0.0
    %1422 = vmatpush.msra.mxu0 0.0
    %1423 = vmatpush.msra.mxu0 0.0
    %1424 = vmatpush.msra.mxu0 0.0
    %1425 = vmatpush.msra.mxu0 0.0
    %1426 = vmatpush.msra.mxu0 0.0
    %1427 = vmatpush.msra.mxu0 0.0
    %1428 = vmatpush.msra.mxu0 0.0
    %1429 = vmatpush.msra.mxu0 0.0
    %1430 = vmatpush.msra.mxu0 0.0
    %1431 = vmatpush.msra.mxu0 0.0
    %1432 = vmatpush.msra.mxu0 0.0
    %1433 = vmatpush.msra.mxu0 %v1412
    %1434 = vmatpush.msra.mxu0 %v1411
    %1435 = vmatpush.msra.mxu0 %v1410
    %1436 = vmatmul.f32.gmra.mxu0 %v1418
    %v1437 = vpop.f32.mrf.mxu0
    %v1438 = vadd.f32 %v1415, %v1437
    %1439 = vdwg.mxu0
    %v1440 = vadd.f32 %v1438, %v1284
    %s1441 = sld [smem:[#allocation10 + $0x280]]
    %v1442 = vstv %s1441
    %v1443 = vmul.f32 %v1440, %v1442
    %s1444 = sld [smem:[#allocation10 + $0x281]]
    %v1445 = vstv %s1444
    %v1446 = vadd.f32 %v1443, %v1445
    %1448 = vrot.lane.b32.xlu0 %v1446, 127
    %v1449 = vpop.permute.xlu0 %1448
    %vm1451 = vcmask 23552
    %v1452 = vsel %vm1451, %v1446, %v1449
    %1453 = vrot.lane.b32.xlu0 %v1446, 126
    %v1454 = vpop.permute.xlu0 %1453
    %v1456 = vsel %vm1451, %v1449, %v1454
    %s1457 = scalar_lea.vmem [#allocation7], 96
    %v1458 = vld [vmem:[%s1457] sm:$0xff]
    %v1459 = vld [vmem:[%s1457 + $0x8] sm:$0xff]
    %s1460 = scalar_lea.vmem [#allocation8], 96
    %v1461 = vld [vmem:[%s1460] sm:$0xff]
    %v1462 = vld [vmem:[%s1460 + $0x8] sm:$0xff]
    %1464 = vset.pattern.permute.xlu0 0
    %1465 = vperm.xlu0 %1464, %v1461
    %v1466 = vpop.permute.xlu0 %1465
    %1469 = vset.pattern.permute.xlu0 0
    %1470 = vperm.xlu0 %1469, %v1462
    %v1471 = vpop.permute.xlu0 %1470
    %v1474 = vsel %vm401, %v1458, 0
    %v1477 = vsel %vm401, %v1459, 0
    %1479 = vmatpush.msra.mxu0 0.0
    %1480 = vmatpush.msra.mxu0 0.0
    %1481 = vmatpush.msra.mxu0 0.0
    %1482 = vmatpush.msra.mxu0 0.0
    %1483 = vmatpush.msra.mxu0 0.0
    %1484 = vmatpush.msra.mxu0 0.0
    %1485 = vmatpush.msra.mxu0 0.0
    %1486 = vmatpush.msra.mxu0 0.0
    %1487 = vmatpush.msra.mxu0 0.0
    %1488 = vmatpush.msra.mxu0 0.0
    %1489 = vmatpush.msra.mxu0 0.0
    %1490 = vmatpush.msra.mxu0 0.0
    %1491 = vmatpush.msra.mxu0 0.0
    %1492 = vmatpush.msra.mxu0 0.0
    %1493 = vmatpush.msra.mxu0 %v1456
    %1494 = vmatpush.msra.mxu0 %v1452
    %1495 = vmatmul.f32.gmra.mxu0 %v1474
    %v1496 = vpop.f32.mrf.mxu0
    %v1497 = vadd.f32 %v1466, %v1496
    %1498 = vmatmul.f32.gmra.mxu0 %v1477
    %v1499 = vpop.f32.mrf.mxu0
    %v1500 = vadd.f32 %v1471, %v1499
    %1501 = vdwg.mxu0
    %v1502 = vtanh.pop %v1497
    %v1503 = vxor.u32 %v1500, 2147483648
    %v1504 = vmul.f32 %v1503, 1.442695
    %v1505 = vpow.pop %v1504
    %v1506 = vadd.f32 %v1505, 1.0
    %v1507 = vrcp.pop %v1506
    %v1508 = vmul.f32 %v1506, %v1507
    %v1509 = vsub.f32 1.0, %v1508
    %v1510 = vmul.f32 %v1507, %v1509
    %v1511 = vadd.f32 %v1507, %v1510
    %vm1512 = vweird.f32 %v1506
    %vm1513 = vweird.f32 %v1507
    %vm1514 = vmor %vm1512, %vm1513
    %v1515 = vsel %vm1514, %v1507, %v1511
    %v1516 = vand.u32 2147483647, %v1506
    %vm1517 = vcmp.eq.f32.partialorder %v1516, 8.507059e+37
    %v1518 = vand.u32 %v1506, 2147483648
    %v1519 = vor.u32 1.1754944e-38, %v1518
    %v1520 = vsel %vm1517, %v1519, %v1515
    %v1521 = vmul.f32 1.0, %v1520
    %v1522 = vmul.f32 %v1502, %v1521
    %1524 = vrot.lane.b32.xlu0 %v1359, 127
    %v1525 = vpop.permute.xlu0 %1524
    %1527 = vrot.lane.b32.xlu0 %v1359, 126
    %v1528 = vpop.permute.xlu0 %1527
    %v1530 = vsel %vm1451, %v1525, %v1528
    %v1531 = vadd.f32 %v1522, %v1530
    %1532 = vmatpush.msra.mxu0 0.0
    %1533 = vmatpush.msra.mxu0 0.0
    %1534 = vmatpush.msra.mxu0 0.0
    %1535 = vmatpush.msra.mxu0 0.0
    %1536 = vmatpush.msra.mxu0 0.0
    %1537 = vmatpush.msra.mxu0 0.0
    %1538 = vmatpush.msra.mxu0 0.0
    %1539 = vmatpush.msra.mxu0 0.0
    %1540 = vmatpush.msra.mxu0 0.0
    %1541 = vmatpush.msra.mxu0 0.0
    %1542 = vmatpush.msra.mxu0 0.0
    %1543 = vmatpush.msra.mxu0 0.0
    %1544 = vmatpush.msra.mxu0 0.0
    %1545 = vmatpush.msra.mxu0 0.0
    %1546 = vmatpush.msra.mxu0 0.0
    %1547 = vmatpush.msra.mxu0 %v1522
    %1548 = vmatmul.f32.gmra.mxu0 %v453
    %v1549 = vpop.f32.mrf.mxu0
    %v1550 = vadd.f32 0.0, %v1549
    %1551 = vdwg.mxu0
    %1552 = vmatpush.msra.mxu0 0.0
    %1553 = vmatpush.msra.mxu0 0.0
    %1554 = vmatpush.msra.mxu0 0.0
    %1555 = vmatpush.msra.mxu0 0.0
    %1556 = vmatpush.msra.mxu0 0.0
    %1557 = vmatpush.msra.mxu0 0.0
    %1558 = vmatpush.msra.mxu0 0.0
    %1559 = vmatpush.msra.mxu0 0.0
    %1560 = vmatpush.msra.mxu0 0.0
    %1561 = vmatpush.msra.mxu0 0.0
    %1562 = vmatpush.msra.mxu0 0.0
    %1563 = vmatpush.msra.mxu0 0.0
    %1564 = vmatpush.msra.mxu0 0.0
    %1565 = vmatpush.msra.mxu0 0.0
    %1566 = vmatpush.msra.mxu0 0.0
    %1567 = vmatpush.msra.mxu0 %v1550
    %1568 = vmatmul.f32.gmra.mxu0 %v453
    %v1569 = vpop.f32.mrf.mxu0
    %v1570 = vadd.f32 0.0, %v1569
    %1571 = vdwg.mxu0
    %1573 = vrot.lane.b32.xlu0 %v1550, 6
    %v1574 = vpop.permute.xlu0 %1573
    %1577 = vrot.lane.b32.xlu0 %v1570, 12
    %v1578 = vpop.permute.xlu0 %1577
    %v1580 = vsel %vm1102, %v1522, %v1574
    %v1581 = vsel %vm381, %v1580, %v1578
    %v1582 = vld [vmem:[#allocation26] sm:$0xff]
    %v1583 = vld [vmem:[#allocation26 + $0x8] sm:$0xff]
    %v1584 = vld [vmem:[#allocation26 + $0x10] sm:$0x3]
    %v1585 = vld [vmem:[%s19] sm:$0x1]
    %v1587 = vperm.slane %v1585, 0
    %v1590 = vsel %vm867, %v1581, 0
    %v1593 = vsel %vm318, %v1584, 0
    %1595 = vmatpush.msra.mxu0 0.0
    %1596 = vmatpush.msra.mxu0 0.0
    %1597 = vmatpush.msra.mxu0 0.0
    %1598 = vmatpush.msra.mxu0 0.0
    %1599 = vmatpush.msra.mxu0 0.0
    %1600 = vmatpush.msra.mxu0 0.0
    %1601 = vmatpush.msra.mxu0 0.0
    %1602 = vmatpush.msra.mxu0 0.0
    %1603 = vmatpush.msra.mxu0 0.0
    %1604 = vmatpush.msra.mxu0 0.0
    %1605 = vmatpush.msra.mxu0 0.0
    %1606 = vmatpush.msra.mxu0 0.0
    %1607 = vmatpush.msra.mxu0 0.0
    %1608 = vmatpush.msra.mxu0 %v1593
    %1609 = vmatpush.msra.mxu0 %v1583
    %1610 = vmatpush.msra.mxu0 %v1582
    %1611 = vmatmul.f32.gmra.mxu0 %v1590
    %v1612 = vpop.f32.mrf.mxu0
    %v1613 = vadd.f32 %v1587, %v1612
    %1614 = vdwg.mxu0
    %v1615 = vadd.f32 %v1613, %v1456
    %s1616 = sld [smem:[#allocation10 + $0x300]]
    %v1617 = vstv %s1616
    %v1618 = vmul.f32 %v1615, %v1617
    %s1619 = sld [smem:[#allocation10 + $0x301]]
    %v1620 = vstv %s1619
    %v1621 = vadd.f32 %v1618, %v1620
    %1623 = vrot.lane.b32.xlu0 %v1621, 126
    %v1624 = vpop.permute.xlu0 %1623
    %vm1626 = vcmask 7168
    %v1627 = vsel %vm1626, %v1621, %v1624
    %1628 = vrot.lane.b32.xlu0 %v1621, 124
    %v1629 = vpop.permute.xlu0 %1628
    %v1631 = vsel %vm1626, %v1624, %v1629
    %s1632 = scalar_lea.vmem [#allocation7], 112
    %v1633 = vld [vmem:[%s1632] sm:$0xff]
    %v1634 = vld [vmem:[%s1632 + $0x8] sm:$0xff]
    %s1635 = scalar_lea.vmem [#allocation8], 112
    %v1636 = vld [vmem:[%s1635] sm:$0xff]
    %v1637 = vld [vmem:[%s1635 + $0x8] sm:$0xff]
    %1639 = vset.pattern.permute.xlu0 0
    %1640 = vperm.xlu0 %1639, %v1636
    %v1641 = vpop.permute.xlu0 %1640
    %1644 = vset.pattern.permute.xlu0 0
    %1645 = vperm.xlu0 %1644, %v1637
    %v1646 = vpop.permute.xlu0 %1645
    %v1649 = vsel %vm401, %v1633, 0
    %v1652 = vsel %vm401, %v1634, 0
    %1654 = vmatpush.msra.mxu0 0.0
    %1655 = vmatpush.msra.mxu0 0.0
    %1656 = vmatpush.msra.mxu0 0.0
    %1657 = vmatpush.msra.mxu0 0.0
    %1658 = vmatpush.msra.mxu0 0.0
    %1659 = vmatpush.msra.mxu0 0.0
    %1660 = vmatpush.msra.mxu0 0.0
    %1661 = vmatpush.msra.mxu0 0.0
    %1662 = vmatpush.msra.mxu0 0.0
    %1663 = vmatpush.msra.mxu0 0.0
    %1664 = vmatpush.msra.mxu0 0.0
    %1665 = vmatpush.msra.mxu0 0.0
    %1666 = vmatpush.msra.mxu0 0.0
    %1667 = vmatpush.msra.mxu0 0.0
    %1668 = vmatpush.msra.mxu0 %v1631
    %1669 = vmatpush.msra.mxu0 %v1627
    %1670 = vmatmul.f32.gmra.mxu0 %v1649
    %v1671 = vpop.f32.mrf.mxu0
    %v1672 = vadd.f32 %v1641, %v1671
    %1673 = vmatmul.f32.gmra.mxu0 %v1652
    %v1674 = vpop.f32.mrf.mxu0
    %v1675 = vadd.f32 %v1646, %v1674
    %1676 = vdwg.mxu0
    %v1677 = vtanh.pop %v1672
    %v1678 = vxor.u32 %v1675, 2147483648
    %v1679 = vmul.f32 %v1678, 1.442695
    %v1680 = vpow.pop %v1679
    %v1681 = vadd.f32 %v1680, 1.0
    %v1682 = vrcp.pop %v1681
    %v1683 = vmul.f32 %v1681, %v1682
    %v1684 = vsub.f32 1.0, %v1683
    %v1685 = vmul.f32 %v1682, %v1684
    %v1686 = vadd.f32 %v1682, %v1685
    %vm1687 = vweird.f32 %v1681
    %vm1688 = vweird.f32 %v1682
    %vm1689 = vmor %vm1687, %vm1688
    %v1690 = vsel %vm1689, %v1682, %v1686
    %v1691 = vand.u32 2147483647, %v1681
    %vm1692 = vcmp.eq.f32.partialorder %v1691, 8.507059e+37
    %v1693 = vand.u32 %v1681, 2147483648
    %v1694 = vor.u32 1.1754944e-38, %v1693
    %v1695 = vsel %vm1692, %v1694, %v1690
    %v1696 = vmul.f32 1.0, %v1695
    %v1697 = vmul.f32 %v1677, %v1696
    %1699 = vrot.lane.b32.xlu0 %v1531, 126
    %v1700 = vpop.permute.xlu0 %1699
    %1702 = vrot.lane.b32.xlu0 %v1531, 124
    %v1703 = vpop.permute.xlu0 %1702
    %v1705 = vsel %vm1626, %v1700, %v1703
    %v1706 = vadd.f32 %v1697, %v1705
    %v1707 = vmax.f32 %v1706, 0.0
    %v1708 = vld [vmem:[%s22] sm:$0x1]
    %1710 = vset.pattern.permute.xlu0 0
    %1711 = vperm.xlu0 %1710, %v1707
    %v1712 = vpop.permute.xlu0 %1711
    %v1715 = vperm.slane %v1708, 0
    %v1717 = vmul.f32 %v1712, %v1715
    %v1718 = vld [vmem:[%s23] sm:$0x1]
    %v1720 = vperm.slane %v1718, 0
    %v1722 = vadd.f32 %v1717, %v1720
    %1723 = vset.pattern.permute.xlu0 1
    %1724 = vperm.xlu0 %1723, %v1707
    %v1725 = vpop.permute.xlu0 %1724
    %v1727 = vmul.f32 %v1725, %v1715
    %v1728 = vadd.f32 %v1727, %v1720
    %1730 = vrot.lane.b32.xlu0 %v1728, 3
    %v1731 = vpop.permute.xlu0 %1730
    %v1733 = vsel %vm1451, %v1722, %v1731
    %1734 = vst.msk [vmem:[%s24] sm:$0xff] %vm1102, %v1733
    // Predicated region
    $region162: #{_lambda_.1} parent=1 // pred_check
      _
    $region163: #{_lambda_.1} parent=1 // pred_check_branch
      %1736 = sbr.rel (0) target = $region165
    $region164: #{_lambda_.1} parent=1 // pred_region
      _
    $region165: #{_lambda_.1} parent=1 // pred_fallthru
      _
    // Predicated region
    $region166: #{_lambda_.1} parent=1 // pred_check
      _
    $region167: #{_lambda_.1} parent=1 // pred_check_branch
      %1738 = sbr.rel (0) target = $region169
    $region168: #{_lambda_.1} parent=1 // pred_region
      _
    $region169: #{_lambda_.1} parent=1 // pred_fallthru
      _
    %1739 = vsyncpa [#allocation3], 1
    %1740 = vsyncpa [#allocation6], 1
    %1741 = vsyncpa [#allocation9], 1
    %1742 = vsyncpa [#allocation13], 1
    %1743 = vsyncpa [#allocation16], 1
    %1744 = vsyncpa [#allocation19], 1
    %1745 = vsyncpa [#allocation22], 1
    %1746 = vsyncpa [#allocation25], 1
    %1747 = vsyncpa [#allocation4], 1

</llo_original>
